<compile_context>
chip_gen: v7x
topology: tpu7x:2x2x1
jax: 0.10.0
libtpu: 0.0.40
codegen_flags: <defaults>
</compile_context>

<pallas_src>
import functools

import jax
import jax.numpy as jnp
from jax import lax
from jax.experimental import pallas as pl
from jax.experimental.pallas import tpu as pltpu


def _dwconv_kernel(x_ref, w_ref, b_ref, o_ref, xp_ref):
    # x_ref : (1, H, W, Cin)        channels-last input slab for this batch
    # w_ref : (kpl, 9, 1, Cin)      per-tap, per-input-channel weights (resident VMEM)
    # b_ref : (kpl, 1, Cin)         per-output-slab bias (resident VMEM)
    # o_ref : (kpl, H, W, Cin)      kpl output slabs (k-major channel order)
    # xp_ref: (H+2, W+2, Cin) f32   zero-padded halo scratch
    _, H, W, C = x_ref.shape
    kpl = w_ref.shape[0]

    # Build the zero-padded input inside the kernel (halo handled here, not in
    # the wrapper, so HBM only sees the unpadded tensor once).
    xp_ref[...] = jnp.zeros_like(xp_ref)
    xp_ref[1:H + 1, 1:W + 1, :] = x_ref[0].astype(jnp.float32)

    accs = [jnp.zeros((H, W, C), jnp.float32) for _ in range(kpl)]
    # Fully unrolled 3x3 taps: each shifted (H, W, C) window is loaded once and
    # reused for all kpl output slabs; weights are per-lane (1, C) vectors so
    # the whole MAC stays on the VPU with no cross-lane work.
    for dy in range(3):
        for dx in range(3):
            tap = xp_ref[dy:dy + H, dx:dx + W, :]
            for k in range(kpl):
                w_vec = w_ref[k, 3 * dy + dx].astype(jnp.float32)   # (1, C)
                accs[k] = accs[k] + w_vec * tap
    for k in range(kpl):
        o_ref[k] = (accs[k] + b_ref[k].astype(jnp.float32)).astype(o_ref.dtype)


@functools.partial(jax.jit, static_argnames=("kernels_per_layer",))
def depthwise_conv(x, weight, bias, *, kernels_per_layer):
    """x: (N, Cin, H, W); weight: (Cin*kpl, 1, 3, 3); bias: (Cin*kpl,)."""
    N, Cin, H, W = x.shape
    kpl = kernels_per_layer
    Cout = Cin * kpl
    assert weight.shape == (Cout, 1, 3, 3)
    assert bias.shape == (Cout,)

    # Layout plumbing (plain JAX, no padding): channels-last input, and the
    # weights/bias regrouped so the kernel works in k-major channel order
    # (output channel co = cin*kpl + k  ->  slab k, lane cin).
    x_nhwc = jnp.transpose(x, (0, 2, 3, 1))                        # (N, H, W, Cin)
    w = (weight.reshape(Cin, kpl, 3, 3)
               .transpose(1, 2, 3, 0)                              # (kpl, 3, 3, Cin)
               .reshape(kpl, 9, 1, Cin))
    b = bias.reshape(Cin, kpl).T.reshape(kpl, 1, Cin)

    grid = (N,)
    out = pl.pallas_call(
        _dwconv_kernel,
        out_shape=jax.ShapeDtypeStruct((N * kpl, H, W, Cin), x.dtype),
        grid_spec=pltpu.PrefetchScalarGridSpec(
            num_scalar_prefetch=0,
            grid=grid,
            in_specs=[
                pl.BlockSpec((1, H, W, Cin), lambda n: (n, 0, 0, 0)),
                # Tiny weights/bias: constant index_map -> fetched once, resident.
                pl.BlockSpec((kpl, 9, 1, Cin), lambda n: (0, 0, 0, 0)),
                pl.BlockSpec((kpl, 1, Cin), lambda n: (0, 0, 0)),
            ],
            out_specs=pl.BlockSpec((kpl, H, W, Cin), lambda n: (n, 0, 0, 0)),
            scratch_shapes=[pltpu.VMEM((H + 2, W + 2, Cin), jnp.float32)],
        ),
        compiler_params=pltpu.CompilerParams(
            dimension_semantics=("parallel",),
            vmem_limit_bytes=32 * 1024 * 1024,
        ),
    )(x_nhwc, w, b)

    # (N*kpl, H, W, Cin) -> (N, Cout, H, W) with PyTorch channel order
    # co = cin*kpl + k (single transpose also handles NHWC -> NCHW).
    out = (out.reshape(N, kpl, H, W, Cin)
              .transpose(0, 4, 1, 2, 3)
              .reshape(N, Cout, H, W))
    return out


def _reference(x, weight, bias, kpl):
    Cin = x.shape[1]
    out = lax.conv_general_dilated(
        x, weight,
        window_strides=(1, 1),
        padding=((1, 1), (1, 1)),
        dimension_numbers=("NCHW", "OIHW", "NCHW"),
        feature_group_count=Cin,
    )
    return out + bias[None, :, None, None]


if __name__ == "__main__":
    # Small shapes consistent with the module: batch=2, nin=4, kpl=2, 16x16.
    N, nin, kpl, H, W = 2, 4, 2, 16, 16
    Cout = nin * kpl

    key = jax.random.PRNGKey(0)
    kx, kw, kb = jax.random.split(key, 3)

    x = jax.random.normal(kx, (N, nin, H, W), dtype=jnp.float32)

    # Deterministic PyTorch-style Conv2d init: U(-1/sqrt(fan_in), 1/sqrt(fan_in)),
    # fan_in = (in_channels/groups) * kH * kW = 1 * 3 * 3 = 9.
    bound = 1.0 / jnp.sqrt(9.0)
    weight = jax.random.uniform(kw, (Cout, 1, 3, 3), jnp.float32, -bound, bound)
    bias = jax.random.uniform(kb, (Cout,), jnp.float32, -bound, bound)

    out = depthwise_conv(x, weight, bias, kernels_per_layer=kpl)
    out = jax.block_until_ready(out)

    ref = _reference(x, weight, bias, kpl)
    assert out.shape == (N, Cout, H, W)
    assert jnp.allclose(out, ref, atol=1e-5, rtol=1e-5), "mismatch vs XLA conv"

    print("KERNEL_OK")
</pallas_src>

<mosaic_0001>
module attributes {stable_mosaic.version = 11 : i64} {
  func.func @_dwconv_kernel(%arg0: i32, %arg1: memref<1x16x16x4xf32, #tpu.memory_space<vmem>>, %arg2: memref<2x9x1x4xf32, #tpu.memory_space<vmem>>, %arg3: memref<2x1x4xf32, #tpu.memory_space<vmem>>, %arg4: memref<2x16x16x4xf32, #tpu.memory_space<vmem>>, %arg5: memref<18x18x4xf32, #tpu.memory_space<vmem>>) attributes {dimension_semantics = [#tpu.dimension_semantics<parallel>], iteration_bounds = array<i64: 2>, scalar_prefetch = 0 : i64, scratch_operands = 1 : i64, tpu.core_type = #tpu.core_type<tc>, window_params = [{transform_indices = @transform_0, window_bounds = array<i64: 1, 16, 16, 4>}, {pipeline_mode = #tpu.pipeline_mode<synchronous>, transform_indices = @transform_1, window_bounds = array<i64: 2, 9, 1, 4>}, {pipeline_mode = #tpu.pipeline_mode<synchronous>, transform_indices = @transform_2, window_bounds = array<i64: 2, 1, 4>}, {transform_indices = @transform_3, window_bounds = array<i64: 2, 16, 16, 4>}]} {
    %cst = arith.constant 0.000000e+00 : f32
    %0 = vector.broadcast %cst : f32 to vector<18x18x4xf32>
    %c0 = arith.constant 0 : index
    %c0_0 = arith.constant 0 : index
    %c0_1 = arith.constant 0 : index
    %1 = vector.load %arg5[%c0, %c0_0, %c0_1] : memref<18x18x4xf32, #tpu.memory_space<vmem>>, vector<18x18x4xf32>
    tpu.vector_store %arg5[%c0, %c0_0, %c0_1], %0 {strides = array<i32>} : memref<18x18x4xf32, #tpu.memory_space<vmem>>, vector<18x18x4xf32>,
    %c0_2 = arith.constant 0 : index
    %c0_3 = arith.constant 0 : index
    %c0_4 = arith.constant 0 : index
    %c0_5 = arith.constant 0 : index
    %2 = vector.load %arg1[%c0_2, %c0_3, %c0_4, %c0_5] : memref<1x16x16x4xf32, #tpu.memory_space<vmem>>, vector<1x16x16x4xf32>
    %3 = vector.shape_cast %2 : vector<1x16x16x4xf32> to vector<16x16x4xf32>
    %c1 = arith.constant 1 : index
    %c1_6 = arith.constant 1 : index
    %c0_7 = arith.constant 0 : index
    %4 = vector.load %arg5[%c1, %c1_6, %c0_7] : memref<18x18x4xf32, #tpu.memory_space<vmem>>, vector<16x16x4xf32>
    tpu.vector_store %arg5[%c1, %c1_6, %c0_7], %3 {strides = array<i32>} : memref<18x18x4xf32, #tpu.memory_space<vmem>>, vector<16x16x4xf32>,
    %cst_8 = arith.constant 0.000000e+00 : f32
    %5 = vector.broadcast %cst_8 : f32 to vector<16x16x4xf32>
    %cst_9 = arith.constant 0.000000e+00 : f32
    %6 = vector.broadcast %cst_9 : f32 to vector<16x16x4xf32>
    %c0_10 = arith.constant 0 : index
    %c0_11 = arith.constant 0 : index
    %c0_12 = arith.constant 0 : index
    %7 = vector.load %arg5[%c0_10, %c0_11, %c0_12] : memref<18x18x4xf32, #tpu.memory_space<vmem>>, vector<16x16x4xf32>
    %c0_13 = arith.constant 0 : index
    %c0_14 = arith.constant 0 : index
    %c0_15 = arith.constant 0 : index
    %c0_16 = arith.constant 0 : index
    %8 = vector.load %arg2[%c0_13, %c0_14, %c0_15, %c0_16] : memref<2x9x1x4xf32, #tpu.memory_space<vmem>>, vector<1x1x1x4xf32>
    %9 = vector.shape_cast %8 : vector<1x1x1x4xf32> to vector<1x4xf32>
    %10 = vector.shape_cast %9 : vector<1x4xf32> to vector<1x1x4xf32>
    %11 = vector.broadcast %10 : vector<1x1x4xf32> to vector<16x16x4xf32>
    %12 = arith.mulf %11, %7 : vector<16x16x4xf32>
    %13 = arith.addf %5, %12 : vector<16x16x4xf32>
    %c1_17 = arith.constant 1 : index
    %c0_18 = arith.constant 0 : index
    %c0_19 = arith.constant 0 : index
    %c0_20 = arith.constant 0 : index
    %14 = vector.load %arg2[%c1_17, %c0_18, %c0_19, %c0_20] : memref<2x9x1x4xf32, #tpu.memory_space<vmem>>, vector<1x1x1x4xf32>
    %15 = vector.shape_cast %14 : vector<1x1x1x4xf32> to vector<1x4xf32>
    %16 = vector.shape_cast %15 : vector<1x4xf32> to vector<1x1x4xf32>
    %17 = vector.broadcast %16 : vector<1x1x4xf32> to vector<16x16x4xf32>
    %18 = arith.mulf %17, %7 : vector<16x16x4xf32>
    %19 = arith.addf %6, %18 : vector<16x16x4xf32>
    %c0_21 = arith.constant 0 : index
    %c1_22 = arith.constant 1 : index
    %c0_23 = arith.constant 0 : index
    %20 = vector.load %arg5[%c0_21, %c1_22, %c0_23] : memref<18x18x4xf32, #tpu.memory_space<vmem>>, vector<16x16x4xf32>
    %c0_24 = arith.constant 0 : index
    %c1_25 = arith.constant 1 : index
    %c0_26 = arith.constant 0 : index
    %c0_27 = arith.constant 0 : index
    %21 = vector.load %arg2[%c0_24, %c1_25, %c0_26, %c0_27] : memref<2x9x1x4xf32, #tpu.memory_space<vmem>>, vector<1x1x1x4xf32>
    %22 = vector.shape_cast %21 : vector<1x1x1x4xf32> to vector<1x4xf32>
    %23 = vector.shape_cast %22 : vector<1x4xf32> to vector<1x1x4xf32>
    %24 = vector.broadcast %23 : vector<1x1x4xf32> to vector<16x16x4xf32>
    %25 = arith.mulf %24, %20 : vector<16x16x4xf32>
    %26 = arith.addf %13, %25 : vector<16x16x4xf32>
    %c1_28 = arith.constant 1 : index
    %c1_29 = arith.constant 1 : index
    %c0_30 = arith.constant 0 : index
    %c0_31 = arith.constant 0 : index
    %27 = vector.load %arg2[%c1_28, %c1_29, %c0_30, %c0_31] : memref<2x9x1x4xf32, #tpu.memory_space<vmem>>, vector<1x1x1x4xf32>
    %28 = vector.shape_cast %27 : vector<1x1x1x4xf32> to vector<1x4xf32>
    %29 = vector.shape_cast %28 : vector<1x4xf32> to vector<1x1x4xf32>
    %30 = vector.broadcast %29 : vector<1x1x4xf32> to vector<16x16x4xf32>
    %31 = arith.mulf %30, %20 : vector<16x16x4xf32>
    %32 = arith.addf %19, %31 : vector<16x16x4xf32>
    %c0_32 = arith.constant 0 : index
    %c2 = arith.constant 2 : index
    %c0_33 = arith.constant 0 : index
    %33 = vector.load %arg5[%c0_32, %c2, %c0_33] : memref<18x18x4xf32, #tpu.memory_space<vmem>>, vector<16x16x4xf32>
    %c0_34 = arith.constant 0 : index
    %c2_35 = arith.constant 2 : index
    %c0_36 = arith.constant 0 : index
    %c0_37 = arith.constant 0 : index
    %34 = vector.load %arg2[%c0_34, %c2_35, %c0_36, %c0_37] : memref<2x9x1x4xf32, #tpu.memory_space<vmem>>, vector<1x1x1x4xf32>
    %35 = vector.shape_cast %34 : vector<1x1x1x4xf32> to vector<1x4xf32>
    %36 = vector.shape_cast %35 : vector<1x4xf32> to vector<1x1x4xf32>
    %37 = vector.broadcast %36 : vector<1x1x4xf32> to vector<16x16x4xf32>
    %38 = arith.mulf %37, %33 : vector<16x16x4xf32>
    %39 = arith.addf %26, %38 : vector<16x16x4xf32>
    %c1_38 = arith.constant 1 : index
    %c2_39 = arith.constant 2 : index
    %c0_40 = arith.constant 0 : index
    %c0_41 = arith.constant 0 : index
    %40 = vector.load %arg2[%c1_38, %c2_39, %c0_40, %c0_41] : memref<2x9x1x4xf32, #tpu.memory_space<vmem>>, vector<1x1x1x4xf32>
    %41 = vector.shape_cast %40 : vector<1x1x1x4xf32> to vector<1x4xf32>
    %42 = vector.shape_cast %41 : vector<1x4xf32> to vector<1x1x4xf32>
    %43 = vector.broadcast %42 : vector<1x1x4xf32> to vector<16x16x4xf32>
    %44 = arith.mulf %43, %33 : vector<16x16x4xf32>
    %45 = arith.addf %32, %44 : vector<16x16x4xf32>
    %c1_42 = arith.constant 1 : index
    %c0_43 = arith.constant 0 : index
    %c0_44 = arith.constant 0 : index
    %46 = vector.load %arg5[%c1_42, %c0_43, %c0_44] : memref<18x18x4xf32, #tpu.memory_space<vmem>>, vector<16x16x4xf32>
    %c0_45 = arith.constant 0 : index
    %c3 = arith.constant 3 : index
    %c0_46 = arith.constant 0 : index
    %c0_47 = arith.constant 0 : index
    %47 = vector.load %arg2[%c0_45, %c3, %c0_46, %c0_47] : memref<2x9x1x4xf32, #tpu.memory_space<vmem>>, vector<1x1x1x4xf32>
    %48 = vector.shape_cast %47 : vector<1x1x1x4xf32> to vector<1x4xf32>
    %49 = vector.shape_cast %48 : vector<1x4xf32> to vector<1x1x4xf32>
    %50 = vector.broadcast %49 : vector<1x1x4xf32> to vector<16x16x4xf32>
    %51 = arith.mulf %50, %46 : vector<16x16x4xf32>
    %52 = arith.addf %39, %51 : vector<16x16x4xf32>
    %c1_48 = arith.constant 1 : index
    %c3_49 = arith.constant 3 : index
    %c0_50 = arith.constant 0 : index
    %c0_51 = arith.constant 0 : index
    %53 = vector.load %arg2[%c1_48, %c3_49, %c0_50, %c0_51] : memref<2x9x1x4xf32, #tpu.memory_space<vmem>>, vector<1x1x1x4xf32>
    %54 = vector.shape_cast %53 : vector<1x1x1x4xf32> to vector<1x4xf32>
    %55 = vector.shape_cast %54 : vector<1x4xf32> to vector<1x1x4xf32>
    %56 = vector.broadcast %55 : vector<1x1x4xf32> to vector<16x16x4xf32>
    %57 = arith.mulf %56, %46 : vector<16x16x4xf32>
    %58 = arith.addf %45, %57 : vector<16x16x4xf32>
    %c1_52 = arith.constant 1 : index
    %c1_53 = arith.constant 1 : index
    %c0_54 = arith.constant 0 : index
    %59 = vector.load %arg5[%c1_52, %c1_53, %c0_54] : memref<18x18x4xf32, #tpu.memory_space<vmem>>, vector<16x16x4xf32>
    %c0_55 = arith.constant 0 : index
    %c4 = arith.constant 4 : index
    %c0_56 = arith.constant 0 : index
    %c0_57 = arith.constant 0 : index
    %60 = vector.load %arg2[%c0_55, %c4, %c0_56, %c0_57] : memref<2x9x1x4xf32, #tpu.memory_space<vmem>>, vector<1x1x1x4xf32>
    %61 = vector.shape_cast %60 : vector<1x1x1x4xf32> to vector<1x4xf32>
    %62 = vector.shape_cast %61 : vector<1x4xf32> to vector<1x1x4xf32>
    %63 = vector.broadcast %62 : vector<1x1x4xf32> to vector<16x16x4xf32>
    %64 = arith.mulf %63, %59 : vector<16x16x4xf32>
    %65 = arith.addf %52, %64 : vector<16x16x4xf32>
    %c1_58 = arith.constant 1 : index
    %c4_59 = arith.constant 4 : index
    %c0_60 = arith.constant 0 : index
    %c0_61 = arith.constant 0 : index
    %66 = vector.load %arg2[%c1_58, %c4_59, %c0_60, %c0_61] : memref<2x9x1x4xf32, #tpu.memory_space<vmem>>, vector<1x1x1x4xf32>
    %67 = vector.shape_cast %66 : vector<1x1x1x4xf32> to vector<1x4xf32>
    %68 = vector.shape_cast %67 : vector<1x4xf32> to vector<1x1x4xf32>
    %69 = vector.broadcast %68 : vector<1x1x4xf32> to vector<16x16x4xf32>
    %70 = arith.mulf %69, %59 : vector<16x16x4xf32>
    %71 = arith.addf %58, %70 : vector<16x16x4xf32>
    %c1_62 = arith.constant 1 : index
    %c2_63 = arith.constant 2 : index
    %c0_64 = arith.constant 0 : index
    %72 = vector.load %arg5[%c1_62, %c2_63, %c0_64] : memref<18x18x4xf32, #tpu.memory_space<vmem>>, vector<16x16x4xf32>
    %c0_65 = arith.constant 0 : index
    %c5 = arith.constant 5 : index
    %c0_66 = arith.constant 0 : index
    %c0_67 = arith.constant 0 : index
    %73 = vector.load %arg2[%c0_65, %c5, %c0_66, %c0_67] : memref<2x9x1x4xf32, #tpu.memory_space<vmem>>, vector<1x1x1x4xf32>
    %74 = vector.shape_cast %73 : vector<1x1x1x4xf32> to vector<1x4xf32>
    %75 = vector.shape_cast %74 : vector<1x4xf32> to vector<1x1x4xf32>
    %76 = vector.broadcast %75 : vector<1x1x4xf32> to vector<16x16x4xf32>
    %77 = arith.mulf %76, %72 : vector<16x16x4xf32>
    %78 = arith.addf %65, %77 : vector<16x16x4xf32>
    %c1_68 = arith.constant 1 : index
    %c5_69 = arith.constant 5 : index
    %c0_70 = arith.constant 0 : index
    %c0_71 = arith.constant 0 : index
    %79 = vector.load %arg2[%c1_68, %c5_69, %c0_70, %c0_71] : memref<2x9x1x4xf32, #tpu.memory_space<vmem>>, vector<1x1x1x4xf32>
    %80 = vector.shape_cast %79 : vector<1x1x1x4xf32> to vector<1x4xf32>
    %81 = vector.shape_cast %80 : vector<1x4xf32> to vector<1x1x4xf32>
    %82 = vector.broadcast %81 : vector<1x1x4xf32> to vector<16x16x4xf32>
    %83 = arith.mulf %82, %72 : vector<16x16x4xf32>
    %84 = arith.addf %71, %83 : vector<16x16x4xf32>
    %c2_72 = arith.constant 2 : index
    %c0_73 = arith.constant 0 : index
    %c0_74 = arith.constant 0 : index
    %85 = vector.load %arg5[%c2_72, %c0_73, %c0_74] : memref<18x18x4xf32, #tpu.memory_space<vmem>>, vector<16x16x4xf32>
    %c0_75 = arith.constant 0 : index
    %c6 = arith.constant 6 : index
    %c0_76 = arith.constant 0 : index
    %c0_77 = arith.constant 0 : index
    %86 = vector.load %arg2[%c0_75, %c6, %c0_76, %c0_77] : memref<2x9x1x4xf32, #tpu.memory_space<vmem>>, vector<1x1x1x4xf32>
    %87 = vector.shape_cast %86 : vector<1x1x1x4xf32> to vector<1x4xf32>
    %88 = vector.shape_cast %87 : vector<1x4xf32> to vector<1x1x4xf32>
    %89 = vector.broadcast %88 : vector<1x1x4xf32> to vector<16x16x4xf32>
    %90 = arith.mulf %89, %85 : vector<16x16x4xf32>
    %91 = arith.addf %78, %90 : vector<16x16x4xf32>
    %c1_78 = arith.constant 1 : index
    %c6_79 = arith.constant 6 : index
    %c0_80 = arith.constant 0 : index
    %c0_81 = arith.constant 0 : index
    %92 = vector.load %arg2[%c1_78, %c6_79, %c0_80, %c0_81] : memref<2x9x1x4xf32, #tpu.memory_space<vmem>>, vector<1x1x1x4xf32>
    %93 = vector.shape_cast %92 : vector<1x1x1x4xf32> to vector<1x4xf32>
    %94 = vector.shape_cast %93 : vector<1x4xf32> to vector<1x1x4xf32>
    %95 = vector.broadcast %94 : vector<1x1x4xf32> to vector<16x16x4xf32>
    %96 = arith.mulf %95, %85 : vector<16x16x4xf32>
    %97 = arith.addf %84, %96 : vector<16x16x4xf32>
    %c2_82 = arith.constant 2 : index
    %c1_83 = arith.constant 1 : index
    %c0_84 = arith.constant 0 : index
    %98 = vector.load %arg5[%c2_82, %c1_83, %c0_84] : memref<18x18x4xf32, #tpu.memory_space<vmem>>, vector<16x16x4xf32>
    %c0_85 = arith.constant 0 : index
    %c7 = arith.constant 7 : index
    %c0_86 = arith.constant 0 : index
    %c0_87 = arith.constant 0 : index
    %99 = vector.load %arg2[%c0_85, %c7, %c0_86, %c0_87] : memref<2x9x1x4xf32, #tpu.memory_space<vmem>>, vector<1x1x1x4xf32>
    %100 = vector.shape_cast %99 : vector<1x1x1x4xf32> to vector<1x4xf32>
    %101 = vector.shape_cast %100 : vector<1x4xf32> to vector<1x1x4xf32>
    %102 = vector.broadcast %101 : vector<1x1x4xf32> to vector<16x16x4xf32>
    %103 = arith.mulf %102, %98 : vector<16x16x4xf32>
    %104 = arith.addf %91, %103 : vector<16x16x4xf32>
    %c1_88 = arith.constant 1 : index
    %c7_89 = arith.constant 7 : index
    %c0_90 = arith.constant 0 : index
    %c0_91 = arith.constant 0 : index
    %105 = vector.load %arg2[%c1_88, %c7_89, %c0_90, %c0_91] : memref<2x9x1x4xf32, #tpu.memory_space<vmem>>, vector<1x1x1x4xf32>
    %106 = vector.shape_cast %105 : vector<1x1x1x4xf32> to vector<1x4xf32>
    %107 = vector.shape_cast %106 : vector<1x4xf32> to vector<1x1x4xf32>
    %108 = vector.broadcast %107 : vector<1x1x4xf32> to vector<16x16x4xf32>
    %109 = arith.mulf %108, %98 : vector<16x16x4xf32>
    %110 = arith.addf %97, %109 : vector<16x16x4xf32>
    %c2_92 = arith.constant 2 : index
    %c2_93 = arith.constant 2 : index
    %c0_94 = arith.constant 0 : index
    %111 = vector.load %arg5[%c2_92, %c2_93, %c0_94] : memref<18x18x4xf32, #tpu.memory_space<vmem>>, vector<16x16x4xf32>
    %c0_95 = arith.constant 0 : index
    %c8 = arith.constant 8 : index
    %c0_96 = arith.constant 0 : index
    %c0_97 = arith.constant 0 : index
    %112 = vector.load %arg2[%c0_95, %c8, %c0_96, %c0_97] : memref<2x9x1x4xf32, #tpu.memory_space<vmem>>, vector<1x1x1x4xf32>
    %113 = vector.shape_cast %112 : vector<1x1x1x4xf32> to vector<1x4xf32>
    %114 = vector.shape_cast %113 : vector<1x4xf32> to vector<1x1x4xf32>
    %115 = vector.broadcast %114 : vector<1x1x4xf32> to vector<16x16x4xf32>
    %116 = arith.mulf %115, %111 : vector<16x16x4xf32>
    %117 = arith.addf %104, %116 : vector<16x16x4xf32>
    %c1_98 = arith.constant 1 : index
    %c8_99 = arith.constant 8 : index
    %c0_100 = arith.constant 0 : index
    %c0_101 = arith.constant 0 : index
    %118 = vector.load %arg2[%c1_98, %c8_99, %c0_100, %c0_101] : memref<2x9x1x4xf32, #tpu.memory_space<vmem>>, vector<1x1x1x4xf32>
    %119 = vector.shape_cast %118 : vector<1x1x1x4xf32> to vector<1x4xf32>
    %120 = vector.shape_cast %119 : vector<1x4xf32> to vector<1x1x4xf32>
    %121 = vector.broadcast %120 : vector<1x1x4xf32> to vector<16x16x4xf32>
    %122 = arith.mulf %121, %111 : vector<16x16x4xf32>
    %123 = arith.addf %110, %122 : vector<16x16x4xf32>
    %c0_102 = arith.constant 0 : index
    %c0_103 = arith.constant 0 : index
    %c0_104 = arith.constant 0 : index
    %124 = vector.load %arg3[%c0_102, %c0_103, %c0_104] : memref<2x1x4xf32, #tpu.memory_space<vmem>>, vector<1x1x4xf32>
    %125 = vector.shape_cast %124 : vector<1x1x4xf32> to vector<1x4xf32>
    %126 = vector.shape_cast %125 : vector<1x4xf32> to vector<1x1x4xf32>
    %127 = vector.broadcast %126 : vector<1x1x4xf32> to vector<16x16x4xf32>
    %128 = arith.addf %117, %127 : vector<16x16x4xf32>
    %c0_105 = arith.constant 0 : index
    %c0_106 = arith.constant 0 : index
    %c0_107 = arith.constant 0 : index
    %c0_108 = arith.constant 0 : index
    %129 = vector.load %arg4[%c0_105, %c0_106, %c0_107, %c0_108] : memref<2x16x16x4xf32, #tpu.memory_space<vmem>>, vector<1x16x16x4xf32>
    %130 = vector.shape_cast %129 : vector<1x16x16x4xf32> to vector<16x16x4xf32>
    %131 = vector.shape_cast %128 : vector<16x16x4xf32> to vector<1x16x16x4xf32>
    tpu.vector_store %arg4[%c0_105, %c0_106, %c0_107, %c0_108], %131 {strides = array<i32>} : memref<2x16x16x4xf32, #tpu.memory_space<vmem>>, vector<1x16x16x4xf32>,
    %c1_109 = arith.constant 1 : index
    %c0_110 = arith.constant 0 : index
    %c0_111 = arith.constant 0 : index
    %132 = vector.load %arg3[%c1_109, %c0_110, %c0_111] : memref<2x1x4xf32, #tpu.memory_space<vmem>>, vector<1x1x4xf32>
    %133 = vector.shape_cast %132 : vector<1x1x4xf32> to vector<1x4xf32>
    %134 = vector.shape_cast %133 : vector<1x4xf32> to vector<1x1x4xf32>
    %135 = vector.broadcast %134 : vector<1x1x4xf32> to vector<16x16x4xf32>
    %136 = arith.addf %123, %135 : vector<16x16x4xf32>
    %c1_112 = arith.constant 1 : index
    %c0_113 = arith.constant 0 : index
    %c0_114 = arith.constant 0 : index
    %c0_115 = arith.constant 0 : index
    %137 = vector.load %arg4[%c1_112, %c0_113, %c0_114, %c0_115] : memref<2x16x16x4xf32, #tpu.memory_space<vmem>>, vector<1x16x16x4xf32>
    %138 = vector.shape_cast %137 : vector<1x16x16x4xf32> to vector<16x16x4xf32>
    %139 = vector.shape_cast %136 : vector<16x16x4xf32> to vector<1x16x16x4xf32>
    tpu.vector_store %arg4[%c1_112, %c0_113, %c0_114, %c0_115], %139 {strides = array<i32>} : memref<2x16x16x4xf32, #tpu.memory_space<vmem>>, vector<1x16x16x4xf32>,
    return
  }
  func.func @transform_0(%arg0: i32) -> (i32, i32, i32, i32) {
    %c0_i32 = arith.constant 0 : i32
    %c0_i32_0 = arith.constant 0 : i32
    %c0_i32_1 = arith.constant 0 : i32
    %c0_i32_2 = arith.constant 0 : i32
    return %arg0, %c0_i32, %c0_i32_0, %c0_i32_1 : i32, i32, i32, i32
  }
  func.func @transform_1(%arg0: i32) -> (i32, i32, i32, i32) {
    %c0_i32 = arith.constant 0 : i32
    %c0_i32_0 = arith.constant 0 : i32
    %c0_i32_1 = arith.constant 0 : i32
    %c0_i32_2 = arith.constant 0 : i32
    %c0_i32_3 = arith.constant 0 : i32
    return %c0_i32, %c0_i32_0, %c0_i32_1, %c0_i32_2 : i32, i32, i32, i32
  }
  func.func @transform_2(%arg0: i32) -> (i32, i32, i32) {
    %c0_i32 = arith.constant 0 : i32
    %c0_i32_0 = arith.constant 0 : i32
    %c0_i32_1 = arith.constant 0 : i32
    %c0_i32_2 = arith.constant 0 : i32
    return %c0_i32, %c0_i32_0, %c0_i32_1 : i32, i32, i32
  }
  func.func @transform_3(%arg0: i32) -> (i32, i32, i32, i32) {
    %c0_i32 = arith.constant 0 : i32
    %c0_i32_0 = arith.constant 0 : i32
    %c0_i32_1 = arith.constant 0 : i32
    %c0_i32_2 = arith.constant 0 : i32
    return %arg0, %c0_i32, %c0_i32_0, %c0_i32_1 : i32, i32, i32, i32
  }
}

</mosaic_0001>

<llo_original>
// kernel: depthwise_conv.1
$region0: #{depthwise_conv.1}
  #allocation0 [shape = 'u32[]', space=smem, size = 0x4, offset = 0x4, fixed_abs, tag = 'smem constant byte address 0x4 - core index']
  #allocation1 [shape = 'u32[144,128]{1,0:T(1,128)}', space=vmem, size = 0x12000, scoped, tag = 'internal scratch']
  #allocation2 [shape = 'f32[18,18,4]{2,1,0:T(8,128)}', space=vmem, size = 0x36000, scoped, tag = 'scratch operand']
  %s0 = inlined_call_operand.vmem [shape: f32[2,16,16,4], index: 0, kind: input, shape index: {}]
  %s1 = inlined_call_operand.vmem [shape: f32[2,9,1,4], index: 1, kind: input, shape index: {}]
  %s2 = inlined_call_operand.vmem [shape: f32[2,1,4], index: 2, kind: input, shape index: {}]
  %s3 = inlined_call_operand.vmem [shape: f32[4,16,16,4], index: 3, kind: output, shape index: {}]
  %s4 = sld [smem:[#allocation0]]
  $region45: #{depthwise_conv.1} parent=0
    _
  %s6 = ssub.s32 1, %s4
  %s7 = scalar_select 0, %s6, %s4
  loop: start=0, step=1, limit=4
  $region2: #{depthwise_conv.1} parent=0 // loop_pre_header
    _
  $region3: #{depthwise_conv.1} parent=0 // loop_header
    %s9 = sphi 0, %s13
    %p10 = scmp.ge.s32.totalorder %s9, 4
    %s19 = sphi 0, %s21
    %s22 = sphi 0, %s19
    %s23 = sphi 0, %s22
    %s39 = sphi 0, %s23
    %s43 = sphi 0, %s43
    %s45 = sphi 0, %s43
    %s46 = sphi 0, %s45
    %s60 = sphi 0, %s46
    %s64 = sphi 0, %s64
    %s66 = sphi 0, %s64
    %s67 = sphi 0, %s66
    %s81 = sphi 0, %s67
    %s87 = sphi 0, %s89
    %s90 = sphi 0, %s87
    %s91 = sphi 0, %s90
    %s107 = sphi 0, %s91
  $region4: #{depthwise_conv.1} parent=0 // loop_header_branch
    %12 = sbr.rel (%p10) target = $region8
  $region5: #{depthwise_conv.1} parent=0 // loop_body
    %s14 = ssub.s32 %s9, 1
    %s15 = ssub.s32 %s9, 2
    %s16 = sadd.s32 %s9, 1
    %s17 = ssub.s32 %s9, %s16
    %p18 = scmp.eq.s32.totalorder %s17, 0
    %s20 = sadd.s32 %s19, 1
    %s21 = scalar_select %p18, %s19, %s20
    %p24 = pneg %p18
    %p25 = scmp.eq.s32.totalorder %s9, 1
    %p26 = por %p24, %p25
    %p27 = scmp.ne.s32.totalorder %s19, %s22
    %p28 = scmp.eq.s32.totalorder %s9, 0
    %p29 = por %p27, %p28
    %p30 = scmp.ne.s32.totalorder %s19, %s22
    %p31 = scmp.eq.s32.totalorder %s14, 1
    %p32 = por %p30, %p31
    %p33 = scmp.ne.s32.totalorder %s22, %s23
    %p34 = scmp.eq.s32.totalorder %s14, 0
    %p35 = por %p33, %p34
    %p36 = scmp.ne.s32.totalorder %s22, %s23
    %p37 = scmp.eq.s32.totalorder %s15, 1
    %p38 = por %p36, %p37
    %p40 = scmp.ne.s32.totalorder %s23, %s39
    %p41 = scmp.eq.s32.totalorder %s15, 0
    %p42 = por %p40, %p41
    %s44 = sadd.s32 %s43, 1
    %p47 = scmp.eq.s32.totalorder %s9, 1
    %p48 = scmp.ne.s32.totalorder %s43, %s45
    %p49 = scmp.eq.s32.totalorder %s9, 0
    %p50 = por %p48, %p49
    %p51 = scmp.ne.s32.totalorder %s43, %s45
    %p52 = scmp.eq.s32.totalorder %s14, 1
    %p53 = por %p51, %p52
    %p54 = scmp.ne.s32.totalorder %s45, %s46
    %p55 = scmp.eq.s32.totalorder %s14, 0
    %p56 = por %p54, %p55
    %p57 = scmp.ne.s32.totalorder %s45, %s46
    %p58 = scmp.eq.s32.totalorder %s15, 1
    %p59 = por %p57, %p58
    %p61 = scmp.ne.s32.totalorder %s46, %s60
    %p62 = scmp.eq.s32.totalorder %s15, 0
    %p63 = por %p61, %p62
    %s65 = sadd.s32 %s64, 1
    %p68 = scmp.eq.s32.totalorder %s9, 1
    %p69 = scmp.ne.s32.totalorder %s64, %s66
    %p70 = scmp.eq.s32.totalorder %s9, 0
    %p71 = por %p69, %p70
    %p72 = scmp.ne.s32.totalorder %s64, %s66
    %p73 = scmp.eq.s32.totalorder %s14, 1
    %p74 = por %p72, %p73
    %p75 = scmp.ne.s32.totalorder %s66, %s67
    %p76 = scmp.eq.s32.totalorder %s14, 0
    %p77 = por %p75, %p76
    %p78 = scmp.ne.s32.totalorder %s66, %s67
    %p79 = scmp.eq.s32.totalorder %s15, 1
    %p80 = por %p78, %p79
    %p82 = scmp.ne.s32.totalorder %s67, %s81
    %p83 = scmp.eq.s32.totalorder %s15, 0
    %p84 = por %p82, %p83
    %s85 = ssub.s32 %s9, %s16
    %p86 = scmp.eq.s32.totalorder %s85, 0
    %s88 = sadd.s32 %s87, 1
    %s89 = scalar_select %p86, %s87, %s88
    %p92 = pneg %p86
    %p93 = scmp.eq.s32.totalorder %s9, 1
    %p94 = por %p92, %p93
    %p95 = scmp.ne.s32.totalorder %s87, %s90
    %p96 = scmp.eq.s32.totalorder %s9, 0
    %p97 = por %p95, %p96
    %p98 = scmp.ne.s32.totalorder %s87, %s90
    %p99 = scmp.eq.s32.totalorder %s14, 1
    %p100 = por %p98, %p99
    %p101 = scmp.ne.s32.totalorder %s90, %s91
    %p102 = scmp.eq.s32.totalorder %s14, 0
    %p103 = por %p101, %p102
    %p104 = scmp.ne.s32.totalorder %s90, %s91
    %p105 = scmp.eq.s32.totalorder %s15, 1
    %p106 = por %p104, %p105
    %p108 = scmp.ne.s32.totalorder %s91, %s107
    %p109 = scmp.eq.s32.totalorder %s15, 0
    %p110 = por %p108, %p109
    %p111 = scmp.le.s32.totalorder 1, %s9
    %p112 = scmp.lt.s32.totalorder %s9, 3
    %p113 = pnand %p111, %p112
    %p114 = pneg %p113
    // Predicated region
    $region9: #{depthwise_conv.1} parent=5 // pred_check
      _
    $region10: #{depthwise_conv.1} parent=5 // pred_check_branch
      %116 = sbr.rel (%p113) target = $region12
    $region11: #{depthwise_conv.1} parent=5 // pred_region
      %s117 = ssub.s32 %s9, 1
      // Predicated region
      $region13: #{depthwise_conv.1} parent=11 // pred_check
        %p118 = pneg %p56
      $region14: #{depthwise_conv.1} parent=11 // pred_check_branch
        %120 = sbr.rel (%p118) target = $region16
      $region15: #{depthwise_conv.1} parent=11 // pred_region
        _
      $region16: #{depthwise_conv.1} parent=11 // pred_fallthru
        _
      // Predicated region
      $region17: #{depthwise_conv.1} parent=11 // pred_check
        %p121 = pneg %p77
      $region18: #{depthwise_conv.1} parent=11 // pred_check_branch
        %123 = sbr.rel (%p121) target = $region20
      $region19: #{depthwise_conv.1} parent=11 // pred_region
        _
      $region20: #{depthwise_conv.1} parent=11 // pred_fallthru
        _
    $region12: #{depthwise_conv.1} parent=5 // pred_fallthru
      _
    %p124 = scmp.lt.s32.totalorder %s9, 2
    // Predicated region
    $region21: #{depthwise_conv.1} parent=5 // pred_check
      %p125 = pneg %p124
    $region22: #{depthwise_conv.1} parent=5 // pred_check_branch
      %127 = sbr.rel (%p125) target = $region24
    $region23: #{depthwise_conv.1} parent=5 // pred_region
      // Predicated region
      $region25: #{depthwise_conv.1} parent=23 // pred_check
        %p128 = pneg %p29
      $region26: #{depthwise_conv.1} parent=23 // pred_check_branch
        %130 = sbr.rel (%p128) target = $region28
      $region27: #{depthwise_conv.1} parent=23 // pred_region
        %p131 = scmp.lt.s32.totalorder %s9, 1
        %s132 = scalar_select %p131, %s9, 1
        %s133 = smul.addr %s132, 32
        %s134 = smul.addr %s133, 8
        %s135 = scalar_lea.vmem %s0, %s134
      $region28: #{depthwise_conv.1} parent=23 // pred_fallthru
        _
    $region24: #{depthwise_conv.1} parent=5 // pred_fallthru
      _
    %p136 = scmp.le.s32.totalorder 1, %s9
    %p137 = scmp.lt.s32.totalorder %s9, 3
    %p138 = pnand %p136, %p137
    %p139 = pneg %p138
    // Predicated region
    $region29: #{depthwise_conv.1} parent=5 // pred_check
      _
    $region30: #{depthwise_conv.1} parent=5 // pred_check_branch
      %141 = sbr.rel (%p138) target = $region32
    $region31: #{depthwise_conv.1} parent=5 // pred_region
      %s142 = ssub.s32 %s9, 1
      %p143 = scmp.lt.s32.totalorder %s14, 1
      %s144 = scalar_select %p143, %s14, 1
      %s145 = smul.addr %s144, 32
      %s146 = smul.addr %s145, 8
      %s147 = scalar_lea.vmem %s0, %s146
      %p148 = pneg %p35
      %p149 = pneg %p32
      %p150 = pneg %p56
      %p151 = pneg %p53
      %p152 = pneg %p77
      %p153 = pneg %p74
      %p154 = pneg %p103
      %p155 = pneg %p100
      %s156 = smul.u32 2, %s14
      %p157 = scmp.lt.s32.totalorder %s156, 3
      %s158 = scalar_select %p157, %s156, 3
      %s159 = smul.addr %s158, 32
      %s160 = smul.addr %s159, 8
      %s161 = scalar_lea.vmem %s3, %s160
      %p162 = scmp.lt.s32.totalorder %s14, 1
      %s163 = scalar_select %p162, %s14, 1
      %s164 = smul.addr %s163, 32
      %s165 = smul.addr %s164, 8
      %s166 = scalar_lea.vmem %s0, %s165
      %s167 = smul.u32 2, %s14
      %p168 = scmp.lt.s32.totalorder %s167, 3
      %s169 = scalar_select %p168, %s167, 3
      %s170 = smul.addr %s169, 32
      %s171 = smul.addr %s170, 8
      %s172 = scalar_lea.vmem %s3, %s171
      %s173 = smul.u32 2, %s14
      %vm174 = vcmask 31744
      %175 = vst.msk [vmem:[#allocation2] sm:$0xff] %vm174, 0.0
      %176 = vst.msk [vmem:[#allocation2 + $0x8] sm:$0xff] %vm174, 0.0
      %vm177 = vcmask 25600
      %178 = vst.msk [vmem:[#allocation2 + $0x10] sm:$0x3] %vm177, 0.0
      %179 = vst.msk [vmem:[#allocation2 + $0x18] sm:$0xff] %vm174, 0.0
      %180 = vst.msk [vmem:[#allocation2 + $0x20] sm:$0xff] %vm174, 0.0
      %181 = vst.msk [vmem:[#allocation2 + $0x28] sm:$0x3] %vm177, 0.0
      %182 = vst.msk [vmem:[#allocation2 + $0x30] sm:$0xff] %vm174, 0.0
      %183 = vst.msk [vmem:[#allocation2 + $0x38] sm:$0xff] %vm174, 0.0
      %184 = vst.msk [vmem:[#allocation2 + $0x40] sm:$0x3] %vm177, 0.0
      %185 = vst.msk [vmem:[#allocation2 + $0x48] sm:$0xff] %vm174, 0.0
      %186 = vst.msk [vmem:[#allocation2 + $0x50] sm:$0xff] %vm174, 0.0
      %187 = vst.msk [vmem:[#allocation2 + $0x58] sm:$0x3] %vm177, 0.0
      %188 = vst.msk [vmem:[#allocation2 + $0x60] sm:$0xff] %vm174, 0.0
      %189 = vst.msk [vmem:[#allocation2 + $0x68] sm:$0xff] %vm174, 0.0
      %190 = vst.msk [vmem:[#allocation2 + $0x70] sm:$0x3] %vm177, 0.0
      %191 = vst.msk [vmem:[#allocation2 + $0x78] sm:$0xff] %vm174, 0.0
      %192 = vst.msk [vmem:[#allocation2 + $0x80] sm:$0xff] %vm174, 0.0
      %193 = vst.msk [vmem:[#allocation2 + $0x88] sm:$0x3] %vm177, 0.0
      %194 = vst.msk [vmem:[#allocation2 + $0x90] sm:$0xff] %vm174, 0.0
      %195 = vst.msk [vmem:[#allocation2 + $0x98] sm:$0xff] %vm174, 0.0
      %196 = vst.msk [vmem:[#allocation2 + $0xa0] sm:$0x3] %vm177, 0.0
      %197 = vst.msk [vmem:[#allocation2 + $0xa8] sm:$0xff] %vm174, 0.0
      %198 = vst.msk [vmem:[#allocation2 + $0xb0] sm:$0xff] %vm174, 0.0
      %199 = vst.msk [vmem:[#allocation2 + $0xb8] sm:$0x3] %vm177, 0.0
      %200 = vst.msk [vmem:[#allocation2 + $0xc0] sm:$0xff] %vm174, 0.0
      %201 = vst.msk [vmem:[#allocation2 + $0xc8] sm:$0xff] %vm174, 0.0
      %202 = vst.msk [vmem:[#allocation2 + $0xd0] sm:$0x3] %vm177, 0.0
      %203 = vst.msk [vmem:[#allocation2 + $0xd8] sm:$0xff] %vm174, 0.0
      %204 = vst.msk [vmem:[#allocation2 + $0xe0] sm:$0xff] %vm174, 0.0
      %205 = vst.msk [vmem:[#allocation2 + $0xe8] sm:$0x3] %vm177, 0.0
      %206 = vst.msk [vmem:[#allocation2 + $0xf0] sm:$0xff] %vm174, 0.0
      %207 = vst.msk [vmem:[#allocation2 + $0xf8] sm:$0xff] %vm174, 0.0
      %208 = vst.msk [vmem:[#allocation2 + $0x100] sm:$0x3] %vm177, 0.0
      %209 = vst.msk [vmem:[#allocation2 + $0x108] sm:$0xff] %vm174, 0.0
      %210 = vst.msk [vmem:[#allocation2 + $0x110] sm:$0xff] %vm174, 0.0
      %211 = vst.msk [vmem:[#allocation2 + $0x118] sm:$0x3] %vm177, 0.0
      %212 = vst.msk [vmem:[#allocation2 + $0x120] sm:$0xff] %vm174, 0.0
      %213 = vst.msk [vmem:[#allocation2 + $0x128] sm:$0xff] %vm174, 0.0
      %214 = vst.msk [vmem:[#allocation2 + $0x130] sm:$0x3] %vm177, 0.0
      %215 = vst.msk [vmem:[#allocation2 + $0x138] sm:$0xff] %vm174, 0.0
      %216 = vst.msk [vmem:[#allocation2 + $0x140] sm:$0xff] %vm174, 0.0
      %217 = vst.msk [vmem:[#allocation2 + $0x148] sm:$0x3] %vm177, 0.0
      %218 = vst.msk [vmem:[#allocation2 + $0x150] sm:$0xff] %vm174, 0.0
      %219 = vst.msk [vmem:[#allocation2 + $0x158] sm:$0xff] %vm174, 0.0
      %220 = vst.msk [vmem:[#allocation2 + $0x160] sm:$0x3] %vm177, 0.0
      %221 = vst.msk [vmem:[#allocation2 + $0x168] sm:$0xff] %vm174, 0.0
      %222 = vst.msk [vmem:[#allocation2 + $0x170] sm:$0xff] %vm174, 0.0
      %223 = vst.msk [vmem:[#allocation2 + $0x178] sm:$0x3] %vm177, 0.0
      %224 = vst.msk [vmem:[#allocation2 + $0x180] sm:$0xff] %vm174, 0.0
      %225 = vst.msk [vmem:[#allocation2 + $0x188] sm:$0xff] %vm174, 0.0
      %226 = vst.msk [vmem:[#allocation2 + $0x190] sm:$0x3] %vm177, 0.0
      %227 = vst.msk [vmem:[#allocation2 + $0x198] sm:$0xff] %vm174, 0.0
      %228 = vst.msk [vmem:[#allocation2 + $0x1a0] sm:$0xff] %vm174, 0.0
      %229 = vst.msk [vmem:[#allocation2 + $0x1a8] sm:$0x3] %vm177, 0.0
      %v230 = vld [vmem:[%s166] sm:$0xff]
      %v231 = vld [vmem:[%s166 + $0x8] sm:$0xff]
      %v232 = vld [vmem:[%s166 + $0x10] sm:$0xff]
      %v233 = vld [vmem:[%s166 + $0x18] sm:$0xff]
      %v234 = vld [vmem:[%s166 + $0x20] sm:$0xff]
      %v235 = vld [vmem:[%s166 + $0x28] sm:$0xff]
      %v236 = vld [vmem:[%s166 + $0x30] sm:$0xff]
      %v237 = vld [vmem:[%s166 + $0x38] sm:$0xff]
      %v238 = vld [vmem:[%s166 + $0x40] sm:$0xff]
      %v239 = vld [vmem:[%s166 + $0x48] sm:$0xff]
      %v240 = vld [vmem:[%s166 + $0x50] sm:$0xff]
      %v241 = vld [vmem:[%s166 + $0x58] sm:$0xff]
      %v242 = vld [vmem:[%s166 + $0x60] sm:$0xff]
      %v243 = vld [vmem:[%s166 + $0x68] sm:$0xff]
      %v244 = vld [vmem:[%s166 + $0x70] sm:$0xff]
      %v245 = vld [vmem:[%s166 + $0x78] sm:$0xff]
      %v246 = vld [vmem:[%s166 + $0x80] sm:$0xff]
      %v247 = vld [vmem:[%s166 + $0x88] sm:$0xff]
      %v248 = vld [vmem:[%s166 + $0x90] sm:$0xff]
      %v249 = vld [vmem:[%s166 + $0x98] sm:$0xff]
      %v250 = vld [vmem:[%s166 + $0xa0] sm:$0xff]
      %v251 = vld [vmem:[%s166 + $0xa8] sm:$0xff]
      %v252 = vld [vmem:[%s166 + $0xb0] sm:$0xff]
      %v253 = vld [vmem:[%s166 + $0xb8] sm:$0xff]
      %v254 = vld [vmem:[%s166 + $0xc0] sm:$0xff]
      %v255 = vld [vmem:[%s166 + $0xc8] sm:$0xff]
      %v256 = vld [vmem:[%s166 + $0xd0] sm:$0xff]
      %v257 = vld [vmem:[%s166 + $0xd8] sm:$0xff]
      %v258 = vld [vmem:[%s166 + $0xe0] sm:$0xff]
      %v259 = vld [vmem:[%s166 + $0xe8] sm:$0xff]
      %v260 = vld [vmem:[%s166 + $0xf0] sm:$0xff]
      %v261 = vld [vmem:[%s166 + $0xf8] sm:$0xff]
      %s262 = scalar_lea.vmem [#allocation2], 24
      %263 = vst.msk [vmem:[%s262 + $0x1] sm:$0xff] %vm174, %v230
      %264 = vst.msk [vmem:[%s262 + $0x9] sm:$0xff] %vm174, %v231
      %265 = vst.msk [vmem:[%s262 + $0x19] sm:$0xff] %vm174, %v232
      %266 = vst.msk [vmem:[%s262 + $0x21] sm:$0xff] %vm174, %v233
      %267 = vst.msk [vmem:[%s262 + $0x31] sm:$0xff] %vm174, %v234
      %268 = vst.msk [vmem:[%s262 + $0x39] sm:$0xff] %vm174, %v235
      %269 = vst.msk [vmem:[%s262 + $0x49] sm:$0xff] %vm174, %v236
      %270 = vst.msk [vmem:[%s262 + $0x51] sm:$0xff] %vm174, %v237
      %271 = vst.msk [vmem:[%s262 + $0x61] sm:$0xff] %vm174, %v238
      %272 = vst.msk [vmem:[%s262 + $0x69] sm:$0xff] %vm174, %v239
      %273 = vst.msk [vmem:[%s262 + $0x79] sm:$0xff] %vm174, %v240
      %274 = vst.msk [vmem:[%s262 + $0x81] sm:$0xff] %vm174, %v241
      %275 = vst.msk [vmem:[%s262 + $0x91] sm:$0xff] %vm174, %v242
      %276 = vst.msk [vmem:[%s262 + $0x99] sm:$0xff] %vm174, %v243
      %277 = vst.msk [vmem:[%s262 + $0xa9] sm:$0xff] %vm174, %v244
      %278 = vst.msk [vmem:[%s262 + $0xb1] sm:$0xff] %vm174, %v245
      %279 = vst.msk [vmem:[%s262 + $0xc1] sm:$0xff] %vm174, %v246
      %280 = vst.msk [vmem:[%s262 + $0xc9] sm:$0xff] %vm174, %v247
      %281 = vst.msk [vmem:[%s262 + $0xd9] sm:$0xff] %vm174, %v248
      %282 = vst.msk [vmem:[%s262 + $0xe1] sm:$0xff] %vm174, %v249
      %283 = vst.msk [vmem:[%s262 + $0xf1] sm:$0xff] %vm174, %v250
      %284 = vst.msk [vmem:[%s262 + $0xf9] sm:$0xff] %vm174, %v251
      %285 = vst.msk [vmem:[%s262 + $0x109] sm:$0xff] %vm174, %v252
      %286 = vst.msk [vmem:[%s262 + $0x111] sm:$0xff] %vm174, %v253
      %287 = vst.msk [vmem:[%s262 + $0x121] sm:$0xff] %vm174, %v254
      %288 = vst.msk [vmem:[%s262 + $0x129] sm:$0xff] %vm174, %v255
      %289 = vst.msk [vmem:[%s262 + $0x139] sm:$0xff] %vm174, %v256
      %290 = vst.msk [vmem:[%s262 + $0x141] sm:$0xff] %vm174, %v257
      %291 = vst.msk [vmem:[%s262 + $0x151] sm:$0xff] %vm174, %v258
      %292 = vst.msk [vmem:[%s262 + $0x159] sm:$0xff] %vm174, %v259
      %293 = vst.msk [vmem:[%s262 + $0x169] sm:$0xff] %vm174, %v260
      %294 = vst.msk [vmem:[%s262 + $0x171] sm:$0xff] %vm174, %v261
      %v295 = vld [vmem:[#allocation2] sm:$0xff]
      %v296 = vld [vmem:[#allocation2 + $0x8] sm:$0xff]
      %v297 = vld [vmem:[#allocation2 + $0x18] sm:$0xff]
      %v298 = vld [vmem:[#allocation2 + $0x20] sm:$0xff]
      %v299 = vld [vmem:[#allocation2 + $0x30] sm:$0xff]
      %v300 = vld [vmem:[#allocation2 + $0x38] sm:$0xff]
      %v301 = vld [vmem:[#allocation2 + $0x48] sm:$0xff]
      %v302 = vld [vmem:[#allocation2 + $0x50] sm:$0xff]
      %v303 = vld [vmem:[#allocation2 + $0x60] sm:$0xff]
      %v304 = vld [vmem:[#allocation2 + $0x68] sm:$0xff]
      %v305 = vld [vmem:[#allocation2 + $0x78] sm:$0xff]
      %v306 = vld [vmem:[#allocation2 + $0x80] sm:$0xff]
      %v307 = vld [vmem:[#allocation2 + $0x90] sm:$0xff]
      %v308 = vld [vmem:[#allocation2 + $0x98] sm:$0xff]
      %v309 = vld [vmem:[#allocation2 + $0xa8] sm:$0xff]
      %v310 = vld [vmem:[#allocation2 + $0xb0] sm:$0xff]
      %v311 = vld [vmem:[#allocation2 + $0xc0] sm:$0xff]
      %v312 = vld [vmem:[#allocation2 + $0xc8] sm:$0xff]
      %v313 = vld [vmem:[#allocation2 + $0xd8] sm:$0xff]
      %v314 = vld [vmem:[#allocation2 + $0xe0] sm:$0xff]
      %v315 = vld [vmem:[#allocation2 + $0xf0] sm:$0xff]
      %v316 = vld [vmem:[#allocation2 + $0xf8] sm:$0xff]
      %v317 = vld [vmem:[#allocation2 + $0x108] sm:$0xff]
      %v318 = vld [vmem:[#allocation2 + $0x110] sm:$0xff]
      %v319 = vld [vmem:[#allocation2 + $0x120] sm:$0xff]
      %v320 = vld [vmem:[#allocation2 + $0x128] sm:$0xff]
      %v321 = vld [vmem:[#allocation2 + $0x138] sm:$0xff]
      %v322 = vld [vmem:[#allocation2 + $0x140] sm:$0xff]
      %v323 = vld [vmem:[#allocation2 + $0x150] sm:$0xff]
      %v324 = vld [vmem:[#allocation2 + $0x158] sm:$0xff]
      %v325 = vld [vmem:[#allocation2 + $0x168] sm:$0xff]
      %v326 = vld [vmem:[#allocation2 + $0x170] sm:$0xff]
      %v327 = vld [vmem:[%s1] sm:$0x1]
      %v329 = vlaneseq
      %v330 = vshrl.u32 %v329, 7
      %v331 = vsub.s32 0, %v330
      %v332 = vrot.slane %v327, %v331
      %v334 = vmul.f32 %v332, %v295
      %v335 = vmul.f32 %v332, %v296
      %v336 = vmul.f32 %v332, %v297
      %v337 = vmul.f32 %v332, %v298
      %v338 = vmul.f32 %v332, %v299
      %v339 = vmul.f32 %v332, %v300
      %v340 = vmul.f32 %v332, %v301
      %v341 = vmul.f32 %v332, %v302
      %v342 = vmul.f32 %v332, %v303
      %v343 = vmul.f32 %v332, %v304
      %v344 = vmul.f32 %v332, %v305
      %v345 = vmul.f32 %v332, %v306
      %v346 = vmul.f32 %v332, %v307
      %v347 = vmul.f32 %v332, %v308
      %v348 = vmul.f32 %v332, %v309
      %v349 = vmul.f32 %v332, %v310
      %v350 = vmul.f32 %v332, %v311
      %v351 = vmul.f32 %v332, %v312
      %v352 = vmul.f32 %v332, %v313
      %v353 = vmul.f32 %v332, %v314
      %v354 = vmul.f32 %v332, %v315
      %v355 = vmul.f32 %v332, %v316
      %v356 = vmul.f32 %v332, %v317
      %v357 = vmul.f32 %v332, %v318
      %v358 = vmul.f32 %v332, %v319
      %v359 = vmul.f32 %v332, %v320
      %v360 = vmul.f32 %v332, %v321
      %v361 = vmul.f32 %v332, %v322
      %v362 = vmul.f32 %v332, %v323
      %v363 = vmul.f32 %v332, %v324
      %v364 = vmul.f32 %v332, %v325
      %v365 = vmul.f32 %v332, %v326
      %v366 = vadd.f32 %v334, 0.0
      %v367 = vadd.f32 %v335, 0.0
      %v368 = vadd.f32 %v336, 0.0
      %v369 = vadd.f32 %v337, 0.0
      %v370 = vadd.f32 %v338, 0.0
      %v371 = vadd.f32 %v339, 0.0
      %v372 = vadd.f32 %v340, 0.0
      %v373 = vadd.f32 %v341, 0.0
      %v374 = vadd.f32 %v342, 0.0
      %v375 = vadd.f32 %v343, 0.0
      %v376 = vadd.f32 %v344, 0.0
      %v377 = vadd.f32 %v345, 0.0
      %v378 = vadd.f32 %v346, 0.0
      %v379 = vadd.f32 %v347, 0.0
      %v380 = vadd.f32 %v348, 0.0
      %v381 = vadd.f32 %v349, 0.0
      %v382 = vadd.f32 %v350, 0.0
      %v383 = vadd.f32 %v351, 0.0
      %v384 = vadd.f32 %v352, 0.0
      %v385 = vadd.f32 %v353, 0.0
      %v386 = vadd.f32 %v354, 0.0
      %v387 = vadd.f32 %v355, 0.0
      %v388 = vadd.f32 %v356, 0.0
      %v389 = vadd.f32 %v357, 0.0
      %v390 = vadd.f32 %v358, 0.0
      %v391 = vadd.f32 %v359, 0.0
      %v392 = vadd.f32 %v360, 0.0
      %v393 = vadd.f32 %v361, 0.0
      %v394 = vadd.f32 %v362, 0.0
      %v395 = vadd.f32 %v363, 0.0
      %v396 = vadd.f32 %v364, 0.0
      %v397 = vadd.f32 %v365, 0.0
      %s398 = scalar_lea.vmem %s1, 9
      %v399 = vld [vmem:[%s398] sm:$0x1]
      %v401 = vlaneseq
      %v402 = vshrl.u32 %v401, 7
      %v403 = vsub.s32 0, %v402
      %v404 = vrot.slane %v399, %v403
      %v406 = vmul.f32 %v404, %v295
      %v407 = vmul.f32 %v404, %v296
      %v408 = vmul.f32 %v404, %v297
      %v409 = vmul.f32 %v404, %v298
      %v410 = vmul.f32 %v404, %v299
      %v411 = vmul.f32 %v404, %v300
      %v412 = vmul.f32 %v404, %v301
      %v413 = vmul.f32 %v404, %v302
      %v414 = vmul.f32 %v404, %v303
      %v415 = vmul.f32 %v404, %v304
      %v416 = vmul.f32 %v404, %v305
      %v417 = vmul.f32 %v404, %v306
      %v418 = vmul.f32 %v404, %v307
      %v419 = vmul.f32 %v404, %v308
      %v420 = vmul.f32 %v404, %v309
      %v421 = vmul.f32 %v404, %v310
      %v422 = vmul.f32 %v404, %v311
      %v423 = vmul.f32 %v404, %v312
      %v424 = vmul.f32 %v404, %v313
      %v425 = vmul.f32 %v404, %v314
      %v426 = vmul.f32 %v404, %v315
      %v427 = vmul.f32 %v404, %v316
      %v428 = vmul.f32 %v404, %v317
      %v429 = vmul.f32 %v404, %v318
      %v430 = vmul.f32 %v404, %v319
      %v431 = vmul.f32 %v404, %v320
      %v432 = vmul.f32 %v404, %v321
      %v433 = vmul.f32 %v404, %v322
      %v434 = vmul.f32 %v404, %v323
      %v435 = vmul.f32 %v404, %v324
      %v436 = vmul.f32 %v404, %v325
      %v437 = vmul.f32 %v404, %v326
      %v438 = vadd.f32 %v406, 0.0
      %v439 = vadd.f32 %v407, 0.0
      %v440 = vadd.f32 %v408, 0.0
      %v441 = vadd.f32 %v409, 0.0
      %v442 = vadd.f32 %v410, 0.0
      %v443 = vadd.f32 %v411, 0.0
      %v444 = vadd.f32 %v412, 0.0
      %v445 = vadd.f32 %v413, 0.0
      %v446 = vadd.f32 %v414, 0.0
      %v447 = vadd.f32 %v415, 0.0
      %v448 = vadd.f32 %v416, 0.0
      %v449 = vadd.f32 %v417, 0.0
      %v450 = vadd.f32 %v418, 0.0
      %v451 = vadd.f32 %v419, 0.0
      %v452 = vadd.f32 %v420, 0.0
      %v453 = vadd.f32 %v421, 0.0
      %v454 = vadd.f32 %v422, 0.0
      %v455 = vadd.f32 %v423, 0.0
      %v456 = vadd.f32 %v424, 0.0
      %v457 = vadd.f32 %v425, 0.0
      %v458 = vadd.f32 %v426, 0.0
      %v459 = vadd.f32 %v427, 0.0
      %v460 = vadd.f32 %v428, 0.0
      %v461 = vadd.f32 %v429, 0.0
      %v462 = vadd.f32 %v430, 0.0
      %v463 = vadd.f32 %v431, 0.0
      %v464 = vadd.f32 %v432, 0.0
      %v465 = vadd.f32 %v433, 0.0
      %v466 = vadd.f32 %v434, 0.0
      %v467 = vadd.f32 %v435, 0.0
      %v468 = vadd.f32 %v436, 0.0
      %v469 = vadd.f32 %v437, 0.0
      %v470 = vld [vmem:[#allocation2 + $0x1] sm:$0xff]
      %v471 = vld [vmem:[#allocation2 + $0x9] sm:$0xff]
      %v472 = vld [vmem:[#allocation2 + $0x19] sm:$0xff]
      %v473 = vld [vmem:[#allocation2 + $0x21] sm:$0xff]
      %v474 = vld [vmem:[#allocation2 + $0x31] sm:$0xff]
      %v475 = vld [vmem:[#allocation2 + $0x39] sm:$0xff]
      %v476 = vld [vmem:[#allocation2 + $0x49] sm:$0xff]
      %v477 = vld [vmem:[#allocation2 + $0x51] sm:$0xff]
      %v478 = vld [vmem:[#allocation2 + $0x61] sm:$0xff]
      %v479 = vld [vmem:[#allocation2 + $0x69] sm:$0xff]
      %v480 = vld [vmem:[#allocation2 + $0x79] sm:$0xff]
      %v481 = vld [vmem:[#allocation2 + $0x81] sm:$0xff]
      %v482 = vld [vmem:[#allocation2 + $0x91] sm:$0xff]
      %v483 = vld [vmem:[#allocation2 + $0x99] sm:$0xff]
      %v484 = vld [vmem:[#allocation2 + $0xa9] sm:$0xff]
      %v485 = vld [vmem:[#allocation2 + $0xb1] sm:$0xff]
      %v486 = vld [vmem:[#allocation2 + $0xc1] sm:$0xff]
      %v487 = vld [vmem:[#allocation2 + $0xc9] sm:$0xff]
      %v488 = vld [vmem:[#allocation2 + $0xd9] sm:$0xff]
      %v489 = vld [vmem:[#allocation2 + $0xe1] sm:$0xff]
      %v490 = vld [vmem:[#allocation2 + $0xf1] sm:$0xff]
      %v491 = vld [vmem:[#allocation2 + $0xf9] sm:$0xff]
      %v492 = vld [vmem:[#allocation2 + $0x109] sm:$0xff]
      %v493 = vld [vmem:[#allocation2 + $0x111] sm:$0xff]
      %v494 = vld [vmem:[#allocation2 + $0x121] sm:$0xff]
      %v495 = vld [vmem:[#allocation2 + $0x129] sm:$0xff]
      %v496 = vld [vmem:[#allocation2 + $0x139] sm:$0xff]
      %v497 = vld [vmem:[#allocation2 + $0x141] sm:$0xff]
      %v498 = vld [vmem:[#allocation2 + $0x151] sm:$0xff]
      %v499 = vld [vmem:[#allocation2 + $0x159] sm:$0xff]
      %v500 = vld [vmem:[#allocation2 + $0x169] sm:$0xff]
      %v501 = vld [vmem:[#allocation2 + $0x171] sm:$0xff]
      %s502 = scalar_lea.vmem %s1, 1
      %v503 = vld [vmem:[%s502] sm:$0x1]
      %v505 = vlaneseq
      %v506 = vshrl.u32 %v505, 7
      %v507 = vsub.s32 0, %v506
      %v508 = vrot.slane %v503, %v507
      %v510 = vmul.f32 %v508, %v470
      %v511 = vmul.f32 %v508, %v471
      %v512 = vmul.f32 %v508, %v472
      %v513 = vmul.f32 %v508, %v473
      %v514 = vmul.f32 %v508, %v474
      %v515 = vmul.f32 %v508, %v475
      %v516 = vmul.f32 %v508, %v476
      %v517 = vmul.f32 %v508, %v477
      %v518 = vmul.f32 %v508, %v478
      %v519 = vmul.f32 %v508, %v479
      %v520 = vmul.f32 %v508, %v480
      %v521 = vmul.f32 %v508, %v481
      %v522 = vmul.f32 %v508, %v482
      %v523 = vmul.f32 %v508, %v483
      %v524 = vmul.f32 %v508, %v484
      %v525 = vmul.f32 %v508, %v485
      %v526 = vmul.f32 %v508, %v486
      %v527 = vmul.f32 %v508, %v487
      %v528 = vmul.f32 %v508, %v488
      %v529 = vmul.f32 %v508, %v489
      %v530 = vmul.f32 %v508, %v490
      %v531 = vmul.f32 %v508, %v491
      %v532 = vmul.f32 %v508, %v492
      %v533 = vmul.f32 %v508, %v493
      %v534 = vmul.f32 %v508, %v494
      %v535 = vmul.f32 %v508, %v495
      %v536 = vmul.f32 %v508, %v496
      %v537 = vmul.f32 %v508, %v497
      %v538 = vmul.f32 %v508, %v498
      %v539 = vmul.f32 %v508, %v499
      %v540 = vmul.f32 %v508, %v500
      %v541 = vmul.f32 %v508, %v501
      %v542 = vadd.f32 %v366, %v510
      %v543 = vadd.f32 %v367, %v511
      %v544 = vadd.f32 %v368, %v512
      %v545 = vadd.f32 %v369, %v513
      %v546 = vadd.f32 %v370, %v514
      %v547 = vadd.f32 %v371, %v515
      %v548 = vadd.f32 %v372, %v516
      %v549 = vadd.f32 %v373, %v517
      %v550 = vadd.f32 %v374, %v518
      %v551 = vadd.f32 %v375, %v519
      %v552 = vadd.f32 %v376, %v520
      %v553 = vadd.f32 %v377, %v521
      %v554 = vadd.f32 %v378, %v522
      %v555 = vadd.f32 %v379, %v523
      %v556 = vadd.f32 %v380, %v524
      %v557 = vadd.f32 %v381, %v525
      %v558 = vadd.f32 %v382, %v526
      %v559 = vadd.f32 %v383, %v527
      %v560 = vadd.f32 %v384, %v528
      %v561 = vadd.f32 %v385, %v529
      %v562 = vadd.f32 %v386, %v530
      %v563 = vadd.f32 %v387, %v531
      %v564 = vadd.f32 %v388, %v532
      %v565 = vadd.f32 %v389, %v533
      %v566 = vadd.f32 %v390, %v534
      %v567 = vadd.f32 %v391, %v535
      %v568 = vadd.f32 %v392, %v536
      %v569 = vadd.f32 %v393, %v537
      %v570 = vadd.f32 %v394, %v538
      %v571 = vadd.f32 %v395, %v539
      %v572 = vadd.f32 %v396, %v540
      %v573 = vadd.f32 %v397, %v541
      %s574 = scalar_lea.vmem %s1, 10
      %v575 = vld [vmem:[%s574] sm:$0x1]
      %v577 = vlaneseq
      %v578 = vshrl.u32 %v577, 7
      %v579 = vsub.s32 0, %v578
      %v580 = vrot.slane %v575, %v579
      %v582 = vmul.f32 %v580, %v470
      %v583 = vmul.f32 %v580, %v471
      %v584 = vmul.f32 %v580, %v472
      %v585 = vmul.f32 %v580, %v473
      %v586 = vmul.f32 %v580, %v474
      %v587 = vmul.f32 %v580, %v475
      %v588 = vmul.f32 %v580, %v476
      %v589 = vmul.f32 %v580, %v477
      %v590 = vmul.f32 %v580, %v478
      %v591 = vmul.f32 %v580, %v479
      %v592 = vmul.f32 %v580, %v480
      %v593 = vmul.f32 %v580, %v481
      %v594 = vmul.f32 %v580, %v482
      %v595 = vmul.f32 %v580, %v483
      %v596 = vmul.f32 %v580, %v484
      %v597 = vmul.f32 %v580, %v485
      %v598 = vmul.f32 %v580, %v486
      %v599 = vmul.f32 %v580, %v487
      %v600 = vmul.f32 %v580, %v488
      %v601 = vmul.f32 %v580, %v489
      %v602 = vmul.f32 %v580, %v490
      %v603 = vmul.f32 %v580, %v491
      %v604 = vmul.f32 %v580, %v492
      %v605 = vmul.f32 %v580, %v493
      %v606 = vmul.f32 %v580, %v494
      %v607 = vmul.f32 %v580, %v495
      %v608 = vmul.f32 %v580, %v496
      %v609 = vmul.f32 %v580, %v497
      %v610 = vmul.f32 %v580, %v498
      %v611 = vmul.f32 %v580, %v499
      %v612 = vmul.f32 %v580, %v500
      %v613 = vmul.f32 %v580, %v501
      %v614 = vadd.f32 %v438, %v582
      %v615 = vadd.f32 %v439, %v583
      %v616 = vadd.f32 %v440, %v584
      %v617 = vadd.f32 %v441, %v585
      %v618 = vadd.f32 %v442, %v586
      %v619 = vadd.f32 %v443, %v587
      %v620 = vadd.f32 %v444, %v588
      %v621 = vadd.f32 %v445, %v589
      %v622 = vadd.f32 %v446, %v590
      %v623 = vadd.f32 %v447, %v591
      %v624 = vadd.f32 %v448, %v592
      %v625 = vadd.f32 %v449, %v593
      %v626 = vadd.f32 %v450, %v594
      %v627 = vadd.f32 %v451, %v595
      %v628 = vadd.f32 %v452, %v596
      %v629 = vadd.f32 %v453, %v597
      %v630 = vadd.f32 %v454, %v598
      %v631 = vadd.f32 %v455, %v599
      %v632 = vadd.f32 %v456, %v600
      %v633 = vadd.f32 %v457, %v601
      %v634 = vadd.f32 %v458, %v602
      %v635 = vadd.f32 %v459, %v603
      %v636 = vadd.f32 %v460, %v604
      %v637 = vadd.f32 %v461, %v605
      %v638 = vadd.f32 %v462, %v606
      %v639 = vadd.f32 %v463, %v607
      %v640 = vadd.f32 %v464, %v608
      %v641 = vadd.f32 %v465, %v609
      %v642 = vadd.f32 %v466, %v610
      %v643 = vadd.f32 %v467, %v611
      %v644 = vadd.f32 %v468, %v612
      %v645 = vadd.f32 %v469, %v613
      %v646 = vld [vmem:[#allocation2 + $0x2] sm:$0xff]
      %v647 = vld [vmem:[#allocation2 + $0xa] sm:$0xff]
      %v648 = vld [vmem:[#allocation2 + $0x1a] sm:$0xff]
      %v649 = vld [vmem:[#allocation2 + $0x22] sm:$0xff]
      %v650 = vld [vmem:[#allocation2 + $0x32] sm:$0xff]
      %v651 = vld [vmem:[#allocation2 + $0x3a] sm:$0xff]
      %v652 = vld [vmem:[#allocation2 + $0x4a] sm:$0xff]
      %v653 = vld [vmem:[#allocation2 + $0x52] sm:$0xff]
      %v654 = vld [vmem:[#allocation2 + $0x62] sm:$0xff]
      %v655 = vld [vmem:[#allocation2 + $0x6a] sm:$0xff]
      %v656 = vld [vmem:[#allocation2 + $0x7a] sm:$0xff]
      %v657 = vld [vmem:[#allocation2 + $0x82] sm:$0xff]
      %v658 = vld [vmem:[#allocation2 + $0x92] sm:$0xff]
      %v659 = vld [vmem:[#allocation2 + $0x9a] sm:$0xff]
      %v660 = vld [vmem:[#allocation2 + $0xaa] sm:$0xff]
      %v661 = vld [vmem:[#allocation2 + $0xb2] sm:$0xff]
      %v662 = vld [vmem:[#allocation2 + $0xc2] sm:$0xff]
      %v663 = vld [vmem:[#allocation2 + $0xca] sm:$0xff]
      %v664 = vld [vmem:[#allocation2 + $0xda] sm:$0xff]
      %v665 = vld [vmem:[#allocation2 + $0xe2] sm:$0xff]
      %v666 = vld [vmem:[#allocation2 + $0xf2] sm:$0xff]
      %v667 = vld [vmem:[#allocation2 + $0xfa] sm:$0xff]
      %v668 = vld [vmem:[#allocation2 + $0x10a] sm:$0xff]
      %v669 = vld [vmem:[#allocation2 + $0x112] sm:$0xff]
      %v670 = vld [vmem:[#allocation2 + $0x122] sm:$0xff]
      %v671 = vld [vmem:[#allocation2 + $0x12a] sm:$0xff]
      %v672 = vld [vmem:[#allocation2 + $0x13a] sm:$0xff]
      %v673 = vld [vmem:[#allocation2 + $0x142] sm:$0xff]
      %v674 = vld [vmem:[#allocation2 + $0x152] sm:$0xff]
      %v675 = vld [vmem:[#allocation2 + $0x15a] sm:$0xff]
      %v676 = vld [vmem:[#allocation2 + $0x16a] sm:$0xff]
      %v677 = vld [vmem:[#allocation2 + $0x172] sm:$0xff]
      %s678 = scalar_lea.vmem %s1, 2
      %v679 = vld [vmem:[%s678] sm:$0x1]
      %v681 = vlaneseq
      %v682 = vshrl.u32 %v681, 7
      %v683 = vsub.s32 0, %v682
      %v684 = vrot.slane %v679, %v683
      %v686 = vmul.f32 %v684, %v646
      %v687 = vmul.f32 %v684, %v647
      %v688 = vmul.f32 %v684, %v648
      %v689 = vmul.f32 %v684, %v649
      %v690 = vmul.f32 %v684, %v650
      %v691 = vmul.f32 %v684, %v651
      %v692 = vmul.f32 %v684, %v652
      %v693 = vmul.f32 %v684, %v653
      %v694 = vmul.f32 %v684, %v654
      %v695 = vmul.f32 %v684, %v655
      %v696 = vmul.f32 %v684, %v656
      %v697 = vmul.f32 %v684, %v657
      %v698 = vmul.f32 %v684, %v658
      %v699 = vmul.f32 %v684, %v659
      %v700 = vmul.f32 %v684, %v660
      %v701 = vmul.f32 %v684, %v661
      %v702 = vmul.f32 %v684, %v662
      %v703 = vmul.f32 %v684, %v663
      %v704 = vmul.f32 %v684, %v664
      %v705 = vmul.f32 %v684, %v665
      %v706 = vmul.f32 %v684, %v666
      %v707 = vmul.f32 %v684, %v667
      %v708 = vmul.f32 %v684, %v668
      %v709 = vmul.f32 %v684, %v669
      %v710 = vmul.f32 %v684, %v670
      %v711 = vmul.f32 %v684, %v671
      %v712 = vmul.f32 %v684, %v672
      %v713 = vmul.f32 %v684, %v673
      %v714 = vmul.f32 %v684, %v674
      %v715 = vmul.f32 %v684, %v675
      %v716 = vmul.f32 %v684, %v676
      %v717 = vmul.f32 %v684, %v677
      %v718 = vadd.f32 %v542, %v686
      %v719 = vadd.f32 %v543, %v687
      %v720 = vadd.f32 %v544, %v688
      %v721 = vadd.f32 %v545, %v689
      %v722 = vadd.f32 %v546, %v690
      %v723 = vadd.f32 %v547, %v691
      %v724 = vadd.f32 %v548, %v692
      %v725 = vadd.f32 %v549, %v693
      %v726 = vadd.f32 %v550, %v694
      %v727 = vadd.f32 %v551, %v695
      %v728 = vadd.f32 %v552, %v696
      %v729 = vadd.f32 %v553, %v697
      %v730 = vadd.f32 %v554, %v698
      %v731 = vadd.f32 %v555, %v699
      %v732 = vadd.f32 %v556, %v700
      %v733 = vadd.f32 %v557, %v701
      %v734 = vadd.f32 %v558, %v702
      %v735 = vadd.f32 %v559, %v703
      %v736 = vadd.f32 %v560, %v704
      %v737 = vadd.f32 %v561, %v705
      %v738 = vadd.f32 %v562, %v706
      %v739 = vadd.f32 %v563, %v707
      %v740 = vadd.f32 %v564, %v708
      %v741 = vadd.f32 %v565, %v709
      %v742 = vadd.f32 %v566, %v710
      %v743 = vadd.f32 %v567, %v711
      %v744 = vadd.f32 %v568, %v712
      %v745 = vadd.f32 %v569, %v713
      %v746 = vadd.f32 %v570, %v714
      %v747 = vadd.f32 %v571, %v715
      %v748 = vadd.f32 %v572, %v716
      %v749 = vadd.f32 %v573, %v717
      %s750 = scalar_lea.vmem %s1, 11
      %v751 = vld [vmem:[%s750] sm:$0x1]
      %v753 = vlaneseq
      %v754 = vshrl.u32 %v753, 7
      %v755 = vsub.s32 0, %v754
      %v756 = vrot.slane %v751, %v755
      %v758 = vmul.f32 %v756, %v646
      %v759 = vmul.f32 %v756, %v647
      %v760 = vmul.f32 %v756, %v648
      %v761 = vmul.f32 %v756, %v649
      %v762 = vmul.f32 %v756, %v650
      %v763 = vmul.f32 %v756, %v651
      %v764 = vmul.f32 %v756, %v652
      %v765 = vmul.f32 %v756, %v653
      %v766 = vmul.f32 %v756, %v654
      %v767 = vmul.f32 %v756, %v655
      %v768 = vmul.f32 %v756, %v656
      %v769 = vmul.f32 %v756, %v657
      %v770 = vmul.f32 %v756, %v658
      %v771 = vmul.f32 %v756, %v659
      %v772 = vmul.f32 %v756, %v660
      %v773 = vmul.f32 %v756, %v661
      %v774 = vmul.f32 %v756, %v662
      %v775 = vmul.f32 %v756, %v663
      %v776 = vmul.f32 %v756, %v664
      %v777 = vmul.f32 %v756, %v665
      %v778 = vmul.f32 %v756, %v666
      %v779 = vmul.f32 %v756, %v667
      %v780 = vmul.f32 %v756, %v668
      %v781 = vmul.f32 %v756, %v669
      %v782 = vmul.f32 %v756, %v670
      %v783 = vmul.f32 %v756, %v671
      %v784 = vmul.f32 %v756, %v672
      %v785 = vmul.f32 %v756, %v673
      %v786 = vmul.f32 %v756, %v674
      %v787 = vmul.f32 %v756, %v675
      %v788 = vmul.f32 %v756, %v676
      %v789 = vmul.f32 %v756, %v677
      %v790 = vadd.f32 %v614, %v758
      %v791 = vadd.f32 %v615, %v759
      %v792 = vadd.f32 %v616, %v760
      %v793 = vadd.f32 %v617, %v761
      %v794 = vadd.f32 %v618, %v762
      %v795 = vadd.f32 %v619, %v763
      %v796 = vadd.f32 %v620, %v764
      %v797 = vadd.f32 %v621, %v765
      %v798 = vadd.f32 %v622, %v766
      %v799 = vadd.f32 %v623, %v767
      %v800 = vadd.f32 %v624, %v768
      %v801 = vadd.f32 %v625, %v769
      %v802 = vadd.f32 %v626, %v770
      %v803 = vadd.f32 %v627, %v771
      %v804 = vadd.f32 %v628, %v772
      %v805 = vadd.f32 %v629, %v773
      %v806 = vadd.f32 %v630, %v774
      %v807 = vadd.f32 %v631, %v775
      %v808 = vadd.f32 %v632, %v776
      %v809 = vadd.f32 %v633, %v777
      %v810 = vadd.f32 %v634, %v778
      %v811 = vadd.f32 %v635, %v779
      %v812 = vadd.f32 %v636, %v780
      %v813 = vadd.f32 %v637, %v781
      %v814 = vadd.f32 %v638, %v782
      %v815 = vadd.f32 %v639, %v783
      %v816 = vadd.f32 %v640, %v784
      %v817 = vadd.f32 %v641, %v785
      %v818 = vadd.f32 %v642, %v786
      %v819 = vadd.f32 %v643, %v787
      %v820 = vadd.f32 %v644, %v788
      %v821 = vadd.f32 %v645, %v789
      %v822 = vld [vmem:[%s262] sm:$0xff]
      %v823 = vld [vmem:[%s262 + $0x8] sm:$0xff]
      %v824 = vld [vmem:[%s262 + $0x18] sm:$0xff]
      %v825 = vld [vmem:[%s262 + $0x20] sm:$0xff]
      %v826 = vld [vmem:[%s262 + $0x30] sm:$0xff]
      %v827 = vld [vmem:[%s262 + $0x38] sm:$0xff]
      %v828 = vld [vmem:[%s262 + $0x48] sm:$0xff]
      %v829 = vld [vmem:[%s262 + $0x50] sm:$0xff]
      %v830 = vld [vmem:[%s262 + $0x60] sm:$0xff]
      %v831 = vld [vmem:[%s262 + $0x68] sm:$0xff]
      %v832 = vld [vmem:[%s262 + $0x78] sm:$0xff]
      %v833 = vld [vmem:[%s262 + $0x80] sm:$0xff]
      %v834 = vld [vmem:[%s262 + $0x90] sm:$0xff]
      %v835 = vld [vmem:[%s262 + $0x98] sm:$0xff]
      %v836 = vld [vmem:[%s262 + $0xa8] sm:$0xff]
      %v837 = vld [vmem:[%s262 + $0xb0] sm:$0xff]
      %v838 = vld [vmem:[%s262 + $0xc0] sm:$0xff]
      %v839 = vld [vmem:[%s262 + $0xc8] sm:$0xff]
      %v840 = vld [vmem:[%s262 + $0xd8] sm:$0xff]
      %v841 = vld [vmem:[%s262 + $0xe0] sm:$0xff]
      %v842 = vld [vmem:[%s262 + $0xf0] sm:$0xff]
      %v843 = vld [vmem:[%s262 + $0xf8] sm:$0xff]
      %v844 = vld [vmem:[%s262 + $0x108] sm:$0xff]
      %v845 = vld [vmem:[%s262 + $0x110] sm:$0xff]
      %v846 = vld [vmem:[%s262 + $0x120] sm:$0xff]
      %v847 = vld [vmem:[%s262 + $0x128] sm:$0xff]
      %v848 = vld [vmem:[%s262 + $0x138] sm:$0xff]
      %v849 = vld [vmem:[%s262 + $0x140] sm:$0xff]
      %v850 = vld [vmem:[%s262 + $0x150] sm:$0xff]
      %v851 = vld [vmem:[%s262 + $0x158] sm:$0xff]
      %v852 = vld [vmem:[%s262 + $0x168] sm:$0xff]
      %v853 = vld [vmem:[%s262 + $0x170] sm:$0xff]
      %s854 = scalar_lea.vmem %s1, 3
      %v855 = vld [vmem:[%s854] sm:$0x1]
      %v857 = vlaneseq
      %v858 = vshrl.u32 %v857, 7
      %v859 = vsub.s32 0, %v858
      %v860 = vrot.slane %v855, %v859
      %v862 = vmul.f32 %v860, %v822
      %v863 = vmul.f32 %v860, %v823
      %v864 = vmul.f32 %v860, %v824
      %v865 = vmul.f32 %v860, %v825
      %v866 = vmul.f32 %v860, %v826
      %v867 = vmul.f32 %v860, %v827
      %v868 = vmul.f32 %v860, %v828
      %v869 = vmul.f32 %v860, %v829
      %v870 = vmul.f32 %v860, %v830
      %v871 = vmul.f32 %v860, %v831
      %v872 = vmul.f32 %v860, %v832
      %v873 = vmul.f32 %v860, %v833
      %v874 = vmul.f32 %v860, %v834
      %v875 = vmul.f32 %v860, %v835
      %v876 = vmul.f32 %v860, %v836
      %v877 = vmul.f32 %v860, %v837
      %v878 = vmul.f32 %v860, %v838
      %v879 = vmul.f32 %v860, %v839
      %v880 = vmul.f32 %v860, %v840
      %v881 = vmul.f32 %v860, %v841
      %v882 = vmul.f32 %v860, %v842
      %v883 = vmul.f32 %v860, %v843
      %v884 = vmul.f32 %v860, %v844
      %v885 = vmul.f32 %v860, %v845
      %v886 = vmul.f32 %v860, %v846
      %v887 = vmul.f32 %v860, %v847
      %v888 = vmul.f32 %v860, %v848
      %v889 = vmul.f32 %v860, %v849
      %v890 = vmul.f32 %v860, %v850
      %v891 = vmul.f32 %v860, %v851
      %v892 = vmul.f32 %v860, %v852
      %v893 = vmul.f32 %v860, %v853
      %v894 = vadd.f32 %v718, %v862
      %v895 = vadd.f32 %v719, %v863
      %v896 = vadd.f32 %v720, %v864
      %v897 = vadd.f32 %v721, %v865
      %v898 = vadd.f32 %v722, %v866
      %v899 = vadd.f32 %v723, %v867
      %v900 = vadd.f32 %v724, %v868
      %v901 = vadd.f32 %v725, %v869
      %v902 = vadd.f32 %v726, %v870
      %v903 = vadd.f32 %v727, %v871
      %v904 = vadd.f32 %v728, %v872
      %v905 = vadd.f32 %v729, %v873
      %v906 = vadd.f32 %v730, %v874
      %v907 = vadd.f32 %v731, %v875
      %v908 = vadd.f32 %v732, %v876
      %v909 = vadd.f32 %v733, %v877
      %v910 = vadd.f32 %v734, %v878
      %v911 = vadd.f32 %v735, %v879
      %v912 = vadd.f32 %v736, %v880
      %v913 = vadd.f32 %v737, %v881
      %v914 = vadd.f32 %v738, %v882
      %v915 = vadd.f32 %v739, %v883
      %v916 = vadd.f32 %v740, %v884
      %v917 = vadd.f32 %v741, %v885
      %v918 = vadd.f32 %v742, %v886
      %v919 = vadd.f32 %v743, %v887
      %v920 = vadd.f32 %v744, %v888
      %v921 = vadd.f32 %v745, %v889
      %v922 = vadd.f32 %v746, %v890
      %v923 = vadd.f32 %v747, %v891
      %v924 = vadd.f32 %v748, %v892
      %v925 = vadd.f32 %v749, %v893
      %s926 = scalar_lea.vmem %s1, 12
      %v927 = vld [vmem:[%s926] sm:$0x1]
      %v929 = vlaneseq
      %v930 = vshrl.u32 %v929, 7
      %v931 = vsub.s32 0, %v930
      %v932 = vrot.slane %v927, %v931
      %v934 = vmul.f32 %v932, %v822
      %v935 = vmul.f32 %v932, %v823
      %v936 = vmul.f32 %v932, %v824
      %v937 = vmul.f32 %v932, %v825
      %v938 = vmul.f32 %v932, %v826
      %v939 = vmul.f32 %v932, %v827
      %v940 = vmul.f32 %v932, %v828
      %v941 = vmul.f32 %v932, %v829
      %v942 = vmul.f32 %v932, %v830
      %v943 = vmul.f32 %v932, %v831
      %v944 = vmul.f32 %v932, %v832
      %v945 = vmul.f32 %v932, %v833
      %v946 = vmul.f32 %v932, %v834
      %v947 = vmul.f32 %v932, %v835
      %v948 = vmul.f32 %v932, %v836
      %v949 = vmul.f32 %v932, %v837
      %v950 = vmul.f32 %v932, %v838
      %v951 = vmul.f32 %v932, %v839
      %v952 = vmul.f32 %v932, %v840
      %v953 = vmul.f32 %v932, %v841
      %v954 = vmul.f32 %v932, %v842
      %v955 = vmul.f32 %v932, %v843
      %v956 = vmul.f32 %v932, %v844
      %v957 = vmul.f32 %v932, %v845
      %v958 = vmul.f32 %v932, %v846
      %v959 = vmul.f32 %v932, %v847
      %v960 = vmul.f32 %v932, %v848
      %v961 = vmul.f32 %v932, %v849
      %v962 = vmul.f32 %v932, %v850
      %v963 = vmul.f32 %v932, %v851
      %v964 = vmul.f32 %v932, %v852
      %v965 = vmul.f32 %v932, %v853
      %v966 = vadd.f32 %v790, %v934
      %v967 = vadd.f32 %v791, %v935
      %v968 = vadd.f32 %v792, %v936
      %v969 = vadd.f32 %v793, %v937
      %v970 = vadd.f32 %v794, %v938
      %v971 = vadd.f32 %v795, %v939
      %v972 = vadd.f32 %v796, %v940
      %v973 = vadd.f32 %v797, %v941
      %v974 = vadd.f32 %v798, %v942
      %v975 = vadd.f32 %v799, %v943
      %v976 = vadd.f32 %v800, %v944
      %v977 = vadd.f32 %v801, %v945
      %v978 = vadd.f32 %v802, %v946
      %v979 = vadd.f32 %v803, %v947
      %v980 = vadd.f32 %v804, %v948
      %v981 = vadd.f32 %v805, %v949
      %v982 = vadd.f32 %v806, %v950
      %v983 = vadd.f32 %v807, %v951
      %v984 = vadd.f32 %v808, %v952
      %v985 = vadd.f32 %v809, %v953
      %v986 = vadd.f32 %v810, %v954
      %v987 = vadd.f32 %v811, %v955
      %v988 = vadd.f32 %v812, %v956
      %v989 = vadd.f32 %v813, %v957
      %v990 = vadd.f32 %v814, %v958
      %v991 = vadd.f32 %v815, %v959
      %v992 = vadd.f32 %v816, %v960
      %v993 = vadd.f32 %v817, %v961
      %v994 = vadd.f32 %v818, %v962
      %v995 = vadd.f32 %v819, %v963
      %v996 = vadd.f32 %v820, %v964
      %v997 = vadd.f32 %v821, %v965
      %v998 = vld [vmem:[%s262 + $0x1] sm:$0xff]
      %v999 = vld [vmem:[%s262 + $0x9] sm:$0xff]
      %v1000 = vld [vmem:[%s262 + $0x19] sm:$0xff]
      %v1001 = vld [vmem:[%s262 + $0x21] sm:$0xff]
      %v1002 = vld [vmem:[%s262 + $0x31] sm:$0xff]
      %v1003 = vld [vmem:[%s262 + $0x39] sm:$0xff]
      %v1004 = vld [vmem:[%s262 + $0x49] sm:$0xff]
      %v1005 = vld [vmem:[%s262 + $0x51] sm:$0xff]
      %v1006 = vld [vmem:[%s262 + $0x61] sm:$0xff]
      %v1007 = vld [vmem:[%s262 + $0x69] sm:$0xff]
      %v1008 = vld [vmem:[%s262 + $0x79] sm:$0xff]
      %v1009 = vld [vmem:[%s262 + $0x81] sm:$0xff]
      %v1010 = vld [vmem:[%s262 + $0x91] sm:$0xff]
      %v1011 = vld [vmem:[%s262 + $0x99] sm:$0xff]
      %v1012 = vld [vmem:[%s262 + $0xa9] sm:$0xff]
      %v1013 = vld [vmem:[%s262 + $0xb1] sm:$0xff]
      %v1014 = vld [vmem:[%s262 + $0xc1] sm:$0xff]
      %v1015 = vld [vmem:[%s262 + $0xc9] sm:$0xff]
      %v1016 = vld [vmem:[%s262 + $0xd9] sm:$0xff]
      %v1017 = vld [vmem:[%s262 + $0xe1] sm:$0xff]
      %v1018 = vld [vmem:[%s262 + $0xf1] sm:$0xff]
      %v1019 = vld [vmem:[%s262 + $0xf9] sm:$0xff]
      %v1020 = vld [vmem:[%s262 + $0x109] sm:$0xff]
      %v1021 = vld [vmem:[%s262 + $0x111] sm:$0xff]
      %v1022 = vld [vmem:[%s262 + $0x121] sm:$0xff]
      %v1023 = vld [vmem:[%s262 + $0x129] sm:$0xff]
      %v1024 = vld [vmem:[%s262 + $0x139] sm:$0xff]
      %v1025 = vld [vmem:[%s262 + $0x141] sm:$0xff]
      %v1026 = vld [vmem:[%s262 + $0x151] sm:$0xff]
      %v1027 = vld [vmem:[%s262 + $0x159] sm:$0xff]
      %v1028 = vld [vmem:[%s262 + $0x169] sm:$0xff]
      %v1029 = vld [vmem:[%s262 + $0x171] sm:$0xff]
      %s1030 = scalar_lea.vmem %s1, 4
      %v1031 = vld [vmem:[%s1030] sm:$0x1]
      %v1033 = vlaneseq
      %v1034 = vshrl.u32 %v1033, 7
      %v1035 = vsub.s32 0, %v1034
      %v1036 = vrot.slane %v1031, %v1035
      %v1038 = vmul.f32 %v1036, %v998
      %v1039 = vmul.f32 %v1036, %v999
      %v1040 = vmul.f32 %v1036, %v1000
      %v1041 = vmul.f32 %v1036, %v1001
      %v1042 = vmul.f32 %v1036, %v1002
      %v1043 = vmul.f32 %v1036, %v1003
      %v1044 = vmul.f32 %v1036, %v1004
      %v1045 = vmul.f32 %v1036, %v1005
      %v1046 = vmul.f32 %v1036, %v1006
      %v1047 = vmul.f32 %v1036, %v1007
      %v1048 = vmul.f32 %v1036, %v1008
      %v1049 = vmul.f32 %v1036, %v1009
      %v1050 = vmul.f32 %v1036, %v1010
      %v1051 = vmul.f32 %v1036, %v1011
      %v1052 = vmul.f32 %v1036, %v1012
      %v1053 = vmul.f32 %v1036, %v1013
      %v1054 = vmul.f32 %v1036, %v1014
      %v1055 = vmul.f32 %v1036, %v1015
      %v1056 = vmul.f32 %v1036, %v1016
      %v1057 = vmul.f32 %v1036, %v1017
      %v1058 = vmul.f32 %v1036, %v1018
      %v1059 = vmul.f32 %v1036, %v1019
      %v1060 = vmul.f32 %v1036, %v1020
      %v1061 = vmul.f32 %v1036, %v1021
      %v1062 = vmul.f32 %v1036, %v1022
      %v1063 = vmul.f32 %v1036, %v1023
      %v1064 = vmul.f32 %v1036, %v1024
      %v1065 = vmul.f32 %v1036, %v1025
      %v1066 = vmul.f32 %v1036, %v1026
      %v1067 = vmul.f32 %v1036, %v1027
      %v1068 = vmul.f32 %v1036, %v1028
      %v1069 = vmul.f32 %v1036, %v1029
      %v1070 = vadd.f32 %v894, %v1038
      %v1071 = vadd.f32 %v895, %v1039
      %v1072 = vadd.f32 %v896, %v1040
      %v1073 = vadd.f32 %v897, %v1041
      %v1074 = vadd.f32 %v898, %v1042
      %v1075 = vadd.f32 %v899, %v1043
      %v1076 = vadd.f32 %v900, %v1044
      %v1077 = vadd.f32 %v901, %v1045
      %v1078 = vadd.f32 %v902, %v1046
      %v1079 = vadd.f32 %v903, %v1047
      %v1080 = vadd.f32 %v904, %v1048
      %v1081 = vadd.f32 %v905, %v1049
      %v1082 = vadd.f32 %v906, %v1050
      %v1083 = vadd.f32 %v907, %v1051
      %v1084 = vadd.f32 %v908, %v1052
      %v1085 = vadd.f32 %v909, %v1053
      %v1086 = vadd.f32 %v910, %v1054
      %v1087 = vadd.f32 %v911, %v1055
      %v1088 = vadd.f32 %v912, %v1056
      %v1089 = vadd.f32 %v913, %v1057
      %v1090 = vadd.f32 %v914, %v1058
      %v1091 = vadd.f32 %v915, %v1059
      %v1092 = vadd.f32 %v916, %v1060
      %v1093 = vadd.f32 %v917, %v1061
      %v1094 = vadd.f32 %v918, %v1062
      %v1095 = vadd.f32 %v919, %v1063
      %v1096 = vadd.f32 %v920, %v1064
      %v1097 = vadd.f32 %v921, %v1065
      %v1098 = vadd.f32 %v922, %v1066
      %v1099 = vadd.f32 %v923, %v1067
      %v1100 = vadd.f32 %v924, %v1068
      %v1101 = vadd.f32 %v925, %v1069
      %s1102 = scalar_lea.vmem %s1, 13
      %v1103 = vld [vmem:[%s1102] sm:$0x1]
      %v1105 = vlaneseq
      %v1106 = vshrl.u32 %v1105, 7
      %v1107 = vsub.s32 0, %v1106
      %v1108 = vrot.slane %v1103, %v1107
      %v1110 = vmul.f32 %v1108, %v998
      %v1111 = vmul.f32 %v1108, %v999
      %v1112 = vmul.f32 %v1108, %v1000
      %v1113 = vmul.f32 %v1108, %v1001
      %v1114 = vmul.f32 %v1108, %v1002
      %v1115 = vmul.f32 %v1108, %v1003
      %v1116 = vmul.f32 %v1108, %v1004
      %v1117 = vmul.f32 %v1108, %v1005
      %v1118 = vmul.f32 %v1108, %v1006
      %v1119 = vmul.f32 %v1108, %v1007
      %v1120 = vmul.f32 %v1108, %v1008
      %v1121 = vmul.f32 %v1108, %v1009
      %v1122 = vmul.f32 %v1108, %v1010
      %v1123 = vmul.f32 %v1108, %v1011
      %v1124 = vmul.f32 %v1108, %v1012
      %v1125 = vmul.f32 %v1108, %v1013
      %v1126 = vmul.f32 %v1108, %v1014
      %v1127 = vmul.f32 %v1108, %v1015
      %v1128 = vmul.f32 %v1108, %v1016
      %v1129 = vmul.f32 %v1108, %v1017
      %v1130 = vmul.f32 %v1108, %v1018
      %v1131 = vmul.f32 %v1108, %v1019
      %v1132 = vmul.f32 %v1108, %v1020
      %v1133 = vmul.f32 %v1108, %v1021
      %v1134 = vmul.f32 %v1108, %v1022
      %v1135 = vmul.f32 %v1108, %v1023
      %v1136 = vmul.f32 %v1108, %v1024
      %v1137 = vmul.f32 %v1108, %v1025
      %v1138 = vmul.f32 %v1108, %v1026
      %v1139 = vmul.f32 %v1108, %v1027
      %v1140 = vmul.f32 %v1108, %v1028
      %v1141 = vmul.f32 %v1108, %v1029
      %v1142 = vadd.f32 %v966, %v1110
      %v1143 = vadd.f32 %v967, %v1111
      %v1144 = vadd.f32 %v968, %v1112
      %v1145 = vadd.f32 %v969, %v1113
      %v1146 = vadd.f32 %v970, %v1114
      %v1147 = vadd.f32 %v971, %v1115
      %v1148 = vadd.f32 %v972, %v1116
      %v1149 = vadd.f32 %v973, %v1117
      %v1150 = vadd.f32 %v974, %v1118
      %v1151 = vadd.f32 %v975, %v1119
      %v1152 = vadd.f32 %v976, %v1120
      %v1153 = vadd.f32 %v977, %v1121
      %v1154 = vadd.f32 %v978, %v1122
      %v1155 = vadd.f32 %v979, %v1123
      %v1156 = vadd.f32 %v980, %v1124
      %v1157 = vadd.f32 %v981, %v1125
      %v1158 = vadd.f32 %v982, %v1126
      %v1159 = vadd.f32 %v983, %v1127
      %v1160 = vadd.f32 %v984, %v1128
      %v1161 = vadd.f32 %v985, %v1129
      %v1162 = vadd.f32 %v986, %v1130
      %v1163 = vadd.f32 %v987, %v1131
      %v1164 = vadd.f32 %v988, %v1132
      %v1165 = vadd.f32 %v989, %v1133
      %v1166 = vadd.f32 %v990, %v1134
      %v1167 = vadd.f32 %v991, %v1135
      %v1168 = vadd.f32 %v992, %v1136
      %v1169 = vadd.f32 %v993, %v1137
      %v1170 = vadd.f32 %v994, %v1138
      %v1171 = vadd.f32 %v995, %v1139
      %v1172 = vadd.f32 %v996, %v1140
      %v1173 = vadd.f32 %v997, %v1141
      %v1174 = vld [vmem:[%s262 + $0x2] sm:$0xff]
      %v1175 = vld [vmem:[%s262 + $0xa] sm:$0xff]
      %v1176 = vld [vmem:[%s262 + $0x1a] sm:$0xff]
      %v1177 = vld [vmem:[%s262 + $0x22] sm:$0xff]
      %v1178 = vld [vmem:[%s262 + $0x32] sm:$0xff]
      %v1179 = vld [vmem:[%s262 + $0x3a] sm:$0xff]
      %v1180 = vld [vmem:[%s262 + $0x4a] sm:$0xff]
      %v1181 = vld [vmem:[%s262 + $0x52] sm:$0xff]
      %v1182 = vld [vmem:[%s262 + $0x62] sm:$0xff]
      %v1183 = vld [vmem:[%s262 + $0x6a] sm:$0xff]
      %v1184 = vld [vmem:[%s262 + $0x7a] sm:$0xff]
      %v1185 = vld [vmem:[%s262 + $0x82] sm:$0xff]
      %v1186 = vld [vmem:[%s262 + $0x92] sm:$0xff]
      %v1187 = vld [vmem:[%s262 + $0x9a] sm:$0xff]
      %v1188 = vld [vmem:[%s262 + $0xaa] sm:$0xff]
      %v1189 = vld [vmem:[%s262 + $0xb2] sm:$0xff]
      %v1190 = vld [vmem:[%s262 + $0xc2] sm:$0xff]
      %v1191 = vld [vmem:[%s262 + $0xca] sm:$0xff]
      %v1192 = vld [vmem:[%s262 + $0xda] sm:$0xff]
      %v1193 = vld [vmem:[%s262 + $0xe2] sm:$0xff]
      %v1194 = vld [vmem:[%s262 + $0xf2] sm:$0xff]
      %v1195 = vld [vmem:[%s262 + $0xfa] sm:$0xff]
      %v1196 = vld [vmem:[%s262 + $0x10a] sm:$0xff]
      %v1197 = vld [vmem:[%s262 + $0x112] sm:$0xff]
      %v1198 = vld [vmem:[%s262 + $0x122] sm:$0xff]
      %v1199 = vld [vmem:[%s262 + $0x12a] sm:$0xff]
      %v1200 = vld [vmem:[%s262 + $0x13a] sm:$0xff]
      %v1201 = vld [vmem:[%s262 + $0x142] sm:$0xff]
      %v1202 = vld [vmem:[%s262 + $0x152] sm:$0xff]
      %v1203 = vld [vmem:[%s262 + $0x15a] sm:$0xff]
      %v1204 = vld [vmem:[%s262 + $0x16a] sm:$0xff]
      %v1205 = vld [vmem:[%s262 + $0x172] sm:$0xff]
      %s1206 = scalar_lea.vmem %s1, 5
      %v1207 = vld [vmem:[%s1206] sm:$0x1]
      %v1209 = vlaneseq
      %v1210 = vshrl.u32 %v1209, 7
      %v1211 = vsub.s32 0, %v1210
      %v1212 = vrot.slane %v1207, %v1211
      %v1214 = vmul.f32 %v1212, %v1174
      %v1215 = vmul.f32 %v1212, %v1175
      %v1216 = vmul.f32 %v1212, %v1176
      %v1217 = vmul.f32 %v1212, %v1177
      %v1218 = vmul.f32 %v1212, %v1178
      %v1219 = vmul.f32 %v1212, %v1179
      %v1220 = vmul.f32 %v1212, %v1180
      %v1221 = vmul.f32 %v1212, %v1181
      %v1222 = vmul.f32 %v1212, %v1182
      %v1223 = vmul.f32 %v1212, %v1183
      %v1224 = vmul.f32 %v1212, %v1184
      %v1225 = vmul.f32 %v1212, %v1185
      %v1226 = vmul.f32 %v1212, %v1186
      %v1227 = vmul.f32 %v1212, %v1187
      %v1228 = vmul.f32 %v1212, %v1188
      %v1229 = vmul.f32 %v1212, %v1189
      %v1230 = vmul.f32 %v1212, %v1190
      %v1231 = vmul.f32 %v1212, %v1191
      %v1232 = vmul.f32 %v1212, %v1192
      %v1233 = vmul.f32 %v1212, %v1193
      %v1234 = vmul.f32 %v1212, %v1194
      %v1235 = vmul.f32 %v1212, %v1195
      %v1236 = vmul.f32 %v1212, %v1196
      %v1237 = vmul.f32 %v1212, %v1197
      %v1238 = vmul.f32 %v1212, %v1198
      %v1239 = vmul.f32 %v1212, %v1199
      %v1240 = vmul.f32 %v1212, %v1200
      %v1241 = vmul.f32 %v1212, %v1201
      %v1242 = vmul.f32 %v1212, %v1202
      %v1243 = vmul.f32 %v1212, %v1203
      %v1244 = vmul.f32 %v1212, %v1204
      %v1245 = vmul.f32 %v1212, %v1205
      %v1246 = vadd.f32 %v1070, %v1214
      %v1247 = vadd.f32 %v1071, %v1215
      %v1248 = vadd.f32 %v1072, %v1216
      %v1249 = vadd.f32 %v1073, %v1217
      %v1250 = vadd.f32 %v1074, %v1218
      %v1251 = vadd.f32 %v1075, %v1219
      %v1252 = vadd.f32 %v1076, %v1220
      %v1253 = vadd.f32 %v1077, %v1221
      %v1254 = vadd.f32 %v1078, %v1222
      %v1255 = vadd.f32 %v1079, %v1223
      %v1256 = vadd.f32 %v1080, %v1224
      %v1257 = vadd.f32 %v1081, %v1225
      %v1258 = vadd.f32 %v1082, %v1226
      %v1259 = vadd.f32 %v1083, %v1227
      %v1260 = vadd.f32 %v1084, %v1228
      %v1261 = vadd.f32 %v1085, %v1229
      %v1262 = vadd.f32 %v1086, %v1230
      %v1263 = vadd.f32 %v1087, %v1231
      %v1264 = vadd.f32 %v1088, %v1232
      %v1265 = vadd.f32 %v1089, %v1233
      %v1266 = vadd.f32 %v1090, %v1234
      %v1267 = vadd.f32 %v1091, %v1235
      %v1268 = vadd.f32 %v1092, %v1236
      %v1269 = vadd.f32 %v1093, %v1237
      %v1270 = vadd.f32 %v1094, %v1238
      %v1271 = vadd.f32 %v1095, %v1239
      %v1272 = vadd.f32 %v1096, %v1240
      %v1273 = vadd.f32 %v1097, %v1241
      %v1274 = vadd.f32 %v1098, %v1242
      %v1275 = vadd.f32 %v1099, %v1243
      %v1276 = vadd.f32 %v1100, %v1244
      %v1277 = vadd.f32 %v1101, %v1245
      %s1278 = scalar_lea.vmem %s1, 14
      %v1279 = vld [vmem:[%s1278] sm:$0x1]
      %v1281 = vlaneseq
      %v1282 = vshrl.u32 %v1281, 7
      %v1283 = vsub.s32 0, %v1282
      %v1284 = vrot.slane %v1279, %v1283
      %v1286 = vmul.f32 %v1284, %v1174
      %v1287 = vmul.f32 %v1284, %v1175
      %v1288 = vmul.f32 %v1284, %v1176
      %v1289 = vmul.f32 %v1284, %v1177
      %v1290 = vmul.f32 %v1284, %v1178
      %v1291 = vmul.f32 %v1284, %v1179
      %v1292 = vmul.f32 %v1284, %v1180
      %v1293 = vmul.f32 %v1284, %v1181
      %v1294 = vmul.f32 %v1284, %v1182
      %v1295 = vmul.f32 %v1284, %v1183
      %v1296 = vmul.f32 %v1284, %v1184
      %v1297 = vmul.f32 %v1284, %v1185
      %v1298 = vmul.f32 %v1284, %v1186
      %v1299 = vmul.f32 %v1284, %v1187
      %v1300 = vmul.f32 %v1284, %v1188
      %v1301 = vmul.f32 %v1284, %v1189
      %v1302 = vmul.f32 %v1284, %v1190
      %v1303 = vmul.f32 %v1284, %v1191
      %v1304 = vmul.f32 %v1284, %v1192
      %v1305 = vmul.f32 %v1284, %v1193
      %v1306 = vmul.f32 %v1284, %v1194
      %v1307 = vmul.f32 %v1284, %v1195
      %v1308 = vmul.f32 %v1284, %v1196
      %v1309 = vmul.f32 %v1284, %v1197
      %v1310 = vmul.f32 %v1284, %v1198
      %v1311 = vmul.f32 %v1284, %v1199
      %v1312 = vmul.f32 %v1284, %v1200
      %v1313 = vmul.f32 %v1284, %v1201
      %v1314 = vmul.f32 %v1284, %v1202
      %v1315 = vmul.f32 %v1284, %v1203
      %v1316 = vmul.f32 %v1284, %v1204
      %v1317 = vmul.f32 %v1284, %v1205
      %v1318 = vadd.f32 %v1142, %v1286
      %v1319 = vadd.f32 %v1143, %v1287
      %v1320 = vadd.f32 %v1144, %v1288
      %v1321 = vadd.f32 %v1145, %v1289
      %v1322 = vadd.f32 %v1146, %v1290
      %v1323 = vadd.f32 %v1147, %v1291
      %v1324 = vadd.f32 %v1148, %v1292
      %v1325 = vadd.f32 %v1149, %v1293
      %v1326 = vadd.f32 %v1150, %v1294
      %v1327 = vadd.f32 %v1151, %v1295
      %v1328 = vadd.f32 %v1152, %v1296
      %v1329 = vadd.f32 %v1153, %v1297
      %v1330 = vadd.f32 %v1154, %v1298
      %v1331 = vadd.f32 %v1155, %v1299
      %v1332 = vadd.f32 %v1156, %v1300
      %v1333 = vadd.f32 %v1157, %v1301
      %v1334 = vadd.f32 %v1158, %v1302
      %v1335 = vadd.f32 %v1159, %v1303
      %v1336 = vadd.f32 %v1160, %v1304
      %v1337 = vadd.f32 %v1161, %v1305
      %v1338 = vadd.f32 %v1162, %v1306
      %v1339 = vadd.f32 %v1163, %v1307
      %v1340 = vadd.f32 %v1164, %v1308
      %v1341 = vadd.f32 %v1165, %v1309
      %v1342 = vadd.f32 %v1166, %v1310
      %v1343 = vadd.f32 %v1167, %v1311
      %v1344 = vadd.f32 %v1168, %v1312
      %v1345 = vadd.f32 %v1169, %v1313
      %v1346 = vadd.f32 %v1170, %v1314
      %v1347 = vadd.f32 %v1171, %v1315
      %v1348 = vadd.f32 %v1172, %v1316
      %v1349 = vadd.f32 %v1173, %v1317
      %s1350 = scalar_lea.vmem [#allocation2], 48
      %v1351 = vld [vmem:[%s1350] sm:$0xff]
      %v1352 = vld [vmem:[%s1350 + $0x8] sm:$0xff]
      %v1353 = vld [vmem:[%s1350 + $0x18] sm:$0xff]
      %v1354 = vld [vmem:[%s1350 + $0x20] sm:$0xff]
      %v1355 = vld [vmem:[%s1350 + $0x30] sm:$0xff]
      %v1356 = vld [vmem:[%s1350 + $0x38] sm:$0xff]
      %v1357 = vld [vmem:[%s1350 + $0x48] sm:$0xff]
      %v1358 = vld [vmem:[%s1350 + $0x50] sm:$0xff]
      %v1359 = vld [vmem:[%s1350 + $0x60] sm:$0xff]
      %v1360 = vld [vmem:[%s1350 + $0x68] sm:$0xff]
      %v1361 = vld [vmem:[%s1350 + $0x78] sm:$0xff]
      %v1362 = vld [vmem:[%s1350 + $0x80] sm:$0xff]
      %v1363 = vld [vmem:[%s1350 + $0x90] sm:$0xff]
      %v1364 = vld [vmem:[%s1350 + $0x98] sm:$0xff]
      %v1365 = vld [vmem:[%s1350 + $0xa8] sm:$0xff]
      %v1366 = vld [vmem:[%s1350 + $0xb0] sm:$0xff]
      %v1367 = vld [vmem:[%s1350 + $0xc0] sm:$0xff]
      %v1368 = vld [vmem:[%s1350 + $0xc8] sm:$0xff]
      %v1369 = vld [vmem:[%s1350 + $0xd8] sm:$0xff]
      %v1370 = vld [vmem:[%s1350 + $0xe0] sm:$0xff]
      %v1371 = vld [vmem:[%s1350 + $0xf0] sm:$0xff]
      %v1372 = vld [vmem:[%s1350 + $0xf8] sm:$0xff]
      %v1373 = vld [vmem:[%s1350 + $0x108] sm:$0xff]
      %v1374 = vld [vmem:[%s1350 + $0x110] sm:$0xff]
      %v1375 = vld [vmem:[%s1350 + $0x120] sm:$0xff]
      %v1376 = vld [vmem:[%s1350 + $0x128] sm:$0xff]
      %v1377 = vld [vmem:[%s1350 + $0x138] sm:$0xff]
      %v1378 = vld [vmem:[%s1350 + $0x140] sm:$0xff]
      %v1379 = vld [vmem:[%s1350 + $0x150] sm:$0xff]
      %v1380 = vld [vmem:[%s1350 + $0x158] sm:$0xff]
      %v1381 = vld [vmem:[%s1350 + $0x168] sm:$0xff]
      %v1382 = vld [vmem:[%s1350 + $0x170] sm:$0xff]
      %s1383 = scalar_lea.vmem %s1, 6
      %v1384 = vld [vmem:[%s1383] sm:$0x1]
      %v1386 = vlaneseq
      %v1387 = vshrl.u32 %v1386, 7
      %v1388 = vsub.s32 0, %v1387
      %v1389 = vrot.slane %v1384, %v1388
      %v1391 = vmul.f32 %v1389, %v1351
      %v1392 = vmul.f32 %v1389, %v1352
      %v1393 = vmul.f32 %v1389, %v1353
      %v1394 = vmul.f32 %v1389, %v1354
      %v1395 = vmul.f32 %v1389, %v1355
      %v1396 = vmul.f32 %v1389, %v1356
      %v1397 = vmul.f32 %v1389, %v1357
      %v1398 = vmul.f32 %v1389, %v1358
      %v1399 = vmul.f32 %v1389, %v1359
      %v1400 = vmul.f32 %v1389, %v1360
      %v1401 = vmul.f32 %v1389, %v1361
      %v1402 = vmul.f32 %v1389, %v1362
      %v1403 = vmul.f32 %v1389, %v1363
      %v1404 = vmul.f32 %v1389, %v1364
      %v1405 = vmul.f32 %v1389, %v1365
      %v1406 = vmul.f32 %v1389, %v1366
      %v1407 = vmul.f32 %v1389, %v1367
      %v1408 = vmul.f32 %v1389, %v1368
      %v1409 = vmul.f32 %v1389, %v1369
      %v1410 = vmul.f32 %v1389, %v1370
      %v1411 = vmul.f32 %v1389, %v1371
      %v1412 = vmul.f32 %v1389, %v1372
      %v1413 = vmul.f32 %v1389, %v1373
      %v1414 = vmul.f32 %v1389, %v1374
      %v1415 = vmul.f32 %v1389, %v1375
      %v1416 = vmul.f32 %v1389, %v1376
      %v1417 = vmul.f32 %v1389, %v1377
      %v1418 = vmul.f32 %v1389, %v1378
      %v1419 = vmul.f32 %v1389, %v1379
      %v1420 = vmul.f32 %v1389, %v1380
      %v1421 = vmul.f32 %v1389, %v1381
      %v1422 = vmul.f32 %v1389, %v1382
      %v1423 = vadd.f32 %v1246, %v1391
      %v1424 = vadd.f32 %v1247, %v1392
      %v1425 = vadd.f32 %v1248, %v1393
      %v1426 = vadd.f32 %v1249, %v1394
      %v1427 = vadd.f32 %v1250, %v1395
      %v1428 = vadd.f32 %v1251, %v1396
      %v1429 = vadd.f32 %v1252, %v1397
      %v1430 = vadd.f32 %v1253, %v1398
      %v1431 = vadd.f32 %v1254, %v1399
      %v1432 = vadd.f32 %v1255, %v1400
      %v1433 = vadd.f32 %v1256, %v1401
      %v1434 = vadd.f32 %v1257, %v1402
      %v1435 = vadd.f32 %v1258, %v1403
      %v1436 = vadd.f32 %v1259, %v1404
      %v1437 = vadd.f32 %v1260, %v1405
      %v1438 = vadd.f32 %v1261, %v1406
      %v1439 = vadd.f32 %v1262, %v1407
      %v1440 = vadd.f32 %v1263, %v1408
      %v1441 = vadd.f32 %v1264, %v1409
      %v1442 = vadd.f32 %v1265, %v1410
      %v1443 = vadd.f32 %v1266, %v1411
      %v1444 = vadd.f32 %v1267, %v1412
      %v1445 = vadd.f32 %v1268, %v1413
      %v1446 = vadd.f32 %v1269, %v1414
      %v1447 = vadd.f32 %v1270, %v1415
      %v1448 = vadd.f32 %v1271, %v1416
      %v1449 = vadd.f32 %v1272, %v1417
      %v1450 = vadd.f32 %v1273, %v1418
      %v1451 = vadd.f32 %v1274, %v1419
      %v1452 = vadd.f32 %v1275, %v1420
      %v1453 = vadd.f32 %v1276, %v1421
      %v1454 = vadd.f32 %v1277, %v1422
      %s1455 = scalar_lea.vmem %s1, 15
      %v1456 = vld [vmem:[%s1455] sm:$0x1]
      %v1458 = vlaneseq
      %v1459 = vshrl.u32 %v1458, 7
      %v1460 = vsub.s32 0, %v1459
      %v1461 = vrot.slane %v1456, %v1460
      %v1463 = vmul.f32 %v1461, %v1351
      %v1464 = vmul.f32 %v1461, %v1352
      %v1465 = vmul.f32 %v1461, %v1353
      %v1466 = vmul.f32 %v1461, %v1354
      %v1467 = vmul.f32 %v1461, %v1355
      %v1468 = vmul.f32 %v1461, %v1356
      %v1469 = vmul.f32 %v1461, %v1357
      %v1470 = vmul.f32 %v1461, %v1358
      %v1471 = vmul.f32 %v1461, %v1359
      %v1472 = vmul.f32 %v1461, %v1360
      %v1473 = vmul.f32 %v1461, %v1361
      %v1474 = vmul.f32 %v1461, %v1362
      %v1475 = vmul.f32 %v1461, %v1363
      %v1476 = vmul.f32 %v1461, %v1364
      %v1477 = vmul.f32 %v1461, %v1365
      %v1478 = vmul.f32 %v1461, %v1366
      %v1479 = vmul.f32 %v1461, %v1367
      %v1480 = vmul.f32 %v1461, %v1368
      %v1481 = vmul.f32 %v1461, %v1369
      %v1482 = vmul.f32 %v1461, %v1370
      %v1483 = vmul.f32 %v1461, %v1371
      %v1484 = vmul.f32 %v1461, %v1372
      %v1485 = vmul.f32 %v1461, %v1373
      %v1486 = vmul.f32 %v1461, %v1374
      %v1487 = vmul.f32 %v1461, %v1375
      %v1488 = vmul.f32 %v1461, %v1376
      %v1489 = vmul.f32 %v1461, %v1377
      %v1490 = vmul.f32 %v1461, %v1378
      %v1491 = vmul.f32 %v1461, %v1379
      %v1492 = vmul.f32 %v1461, %v1380
      %v1493 = vmul.f32 %v1461, %v1381
      %v1494 = vmul.f32 %v1461, %v1382
      %v1495 = vadd.f32 %v1318, %v1463
      %v1496 = vadd.f32 %v1319, %v1464
      %v1497 = vadd.f32 %v1320, %v1465
      %v1498 = vadd.f32 %v1321, %v1466
      %v1499 = vadd.f32 %v1322, %v1467
      %v1500 = vadd.f32 %v1323, %v1468
      %v1501 = vadd.f32 %v1324, %v1469
      %v1502 = vadd.f32 %v1325, %v1470
      %v1503 = vadd.f32 %v1326, %v1471
      %v1504 = vadd.f32 %v1327, %v1472
      %v1505 = vadd.f32 %v1328, %v1473
      %v1506 = vadd.f32 %v1329, %v1474
      %v1507 = vadd.f32 %v1330, %v1475
      %v1508 = vadd.f32 %v1331, %v1476
      %v1509 = vadd.f32 %v1332, %v1477
      %v1510 = vadd.f32 %v1333, %v1478
      %v1511 = vadd.f32 %v1334, %v1479
      %v1512 = vadd.f32 %v1335, %v1480
      %v1513 = vadd.f32 %v1336, %v1481
      %v1514 = vadd.f32 %v1337, %v1482
      %v1515 = vadd.f32 %v1338, %v1483
      %v1516 = vadd.f32 %v1339, %v1484
      %v1517 = vadd.f32 %v1340, %v1485
      %v1518 = vadd.f32 %v1341, %v1486
      %v1519 = vadd.f32 %v1342, %v1487
      %v1520 = vadd.f32 %v1343, %v1488
      %v1521 = vadd.f32 %v1344, %v1489
      %v1522 = vadd.f32 %v1345, %v1490
      %v1523 = vadd.f32 %v1346, %v1491
      %v1524 = vadd.f32 %v1347, %v1492
      %v1525 = vadd.f32 %v1348, %v1493
      %v1526 = vadd.f32 %v1349, %v1494
      %v1527 = vld [vmem:[%s1350 + $0x1] sm:$0xff]
      %v1528 = vld [vmem:[%s1350 + $0x9] sm:$0xff]
      %v1529 = vld [vmem:[%s1350 + $0x19] sm:$0xff]
      %v1530 = vld [vmem:[%s1350 + $0x21] sm:$0xff]
      %v1531 = vld [vmem:[%s1350 + $0x31] sm:$0xff]
      %v1532 = vld [vmem:[%s1350 + $0x39] sm:$0xff]
      %v1533 = vld [vmem:[%s1350 + $0x49] sm:$0xff]
      %v1534 = vld [vmem:[%s1350 + $0x51] sm:$0xff]
      %v1535 = vld [vmem:[%s1350 + $0x61] sm:$0xff]
      %v1536 = vld [vmem:[%s1350 + $0x69] sm:$0xff]
      %v1537 = vld [vmem:[%s1350 + $0x79] sm:$0xff]
      %v1538 = vld [vmem:[%s1350 + $0x81] sm:$0xff]
      %v1539 = vld [vmem:[%s1350 + $0x91] sm:$0xff]
      %v1540 = vld [vmem:[%s1350 + $0x99] sm:$0xff]
      %v1541 = vld [vmem:[%s1350 + $0xa9] sm:$0xff]
      %v1542 = vld [vmem:[%s1350 + $0xb1] sm:$0xff]
      %v1543 = vld [vmem:[%s1350 + $0xc1] sm:$0xff]
      %v1544 = vld [vmem:[%s1350 + $0xc9] sm:$0xff]
      %v1545 = vld [vmem:[%s1350 + $0xd9] sm:$0xff]
      %v1546 = vld [vmem:[%s1350 + $0xe1] sm:$0xff]
      %v1547 = vld [vmem:[%s1350 + $0xf1] sm:$0xff]
      %v1548 = vld [vmem:[%s1350 + $0xf9] sm:$0xff]
      %v1549 = vld [vmem:[%s1350 + $0x109] sm:$0xff]
      %v1550 = vld [vmem:[%s1350 + $0x111] sm:$0xff]
      %v1551 = vld [vmem:[%s1350 + $0x121] sm:$0xff]
      %v1552 = vld [vmem:[%s1350 + $0x129] sm:$0xff]
      %v1553 = vld [vmem:[%s1350 + $0x139] sm:$0xff]
      %v1554 = vld [vmem:[%s1350 + $0x141] sm:$0xff]
      %v1555 = vld [vmem:[%s1350 + $0x151] sm:$0xff]
      %v1556 = vld [vmem:[%s1350 + $0x159] sm:$0xff]
      %v1557 = vld [vmem:[%s1350 + $0x169] sm:$0xff]
      %v1558 = vld [vmem:[%s1350 + $0x171] sm:$0xff]
      %s1559 = scalar_lea.vmem %s1, 7
      %v1560 = vld [vmem:[%s1559] sm:$0x1]
      %v1562 = vlaneseq
      %v1563 = vshrl.u32 %v1562, 7
      %v1564 = vsub.s32 0, %v1563
      %v1565 = vrot.slane %v1560, %v1564
      %v1567 = vmul.f32 %v1565, %v1527
      %v1568 = vmul.f32 %v1565, %v1528
      %v1569 = vmul.f32 %v1565, %v1529
      %v1570 = vmul.f32 %v1565, %v1530
      %v1571 = vmul.f32 %v1565, %v1531
      %v1572 = vmul.f32 %v1565, %v1532
      %v1573 = vmul.f32 %v1565, %v1533
      %v1574 = vmul.f32 %v1565, %v1534
      %v1575 = vmul.f32 %v1565, %v1535
      %v1576 = vmul.f32 %v1565, %v1536
      %v1577 = vmul.f32 %v1565, %v1537
      %v1578 = vmul.f32 %v1565, %v1538
      %v1579 = vmul.f32 %v1565, %v1539
      %v1580 = vmul.f32 %v1565, %v1540
      %v1581 = vmul.f32 %v1565, %v1541
      %v1582 = vmul.f32 %v1565, %v1542
      %v1583 = vmul.f32 %v1565, %v1543
      %v1584 = vmul.f32 %v1565, %v1544
      %v1585 = vmul.f32 %v1565, %v1545
      %v1586 = vmul.f32 %v1565, %v1546
      %v1587 = vmul.f32 %v1565, %v1547
      %v1588 = vmul.f32 %v1565, %v1548
      %v1589 = vmul.f32 %v1565, %v1549
      %v1590 = vmul.f32 %v1565, %v1550
      %v1591 = vmul.f32 %v1565, %v1551
      %v1592 = vmul.f32 %v1565, %v1552
      %v1593 = vmul.f32 %v1565, %v1553
      %v1594 = vmul.f32 %v1565, %v1554
      %v1595 = vmul.f32 %v1565, %v1555
      %v1596 = vmul.f32 %v1565, %v1556
      %v1597 = vmul.f32 %v1565, %v1557
      %v1598 = vmul.f32 %v1565, %v1558
      %v1599 = vadd.f32 %v1423, %v1567
      %v1600 = vadd.f32 %v1424, %v1568
      %v1601 = vadd.f32 %v1425, %v1569
      %v1602 = vadd.f32 %v1426, %v1570
      %v1603 = vadd.f32 %v1427, %v1571
      %v1604 = vadd.f32 %v1428, %v1572
      %v1605 = vadd.f32 %v1429, %v1573
      %v1606 = vadd.f32 %v1430, %v1574
      %v1607 = vadd.f32 %v1431, %v1575
      %v1608 = vadd.f32 %v1432, %v1576
      %v1609 = vadd.f32 %v1433, %v1577
      %v1610 = vadd.f32 %v1434, %v1578
      %v1611 = vadd.f32 %v1435, %v1579
      %v1612 = vadd.f32 %v1436, %v1580
      %v1613 = vadd.f32 %v1437, %v1581
      %v1614 = vadd.f32 %v1438, %v1582
      %v1615 = vadd.f32 %v1439, %v1583
      %v1616 = vadd.f32 %v1440, %v1584
      %v1617 = vadd.f32 %v1441, %v1585
      %v1618 = vadd.f32 %v1442, %v1586
      %v1619 = vadd.f32 %v1443, %v1587
      %v1620 = vadd.f32 %v1444, %v1588
      %v1621 = vadd.f32 %v1445, %v1589
      %v1622 = vadd.f32 %v1446, %v1590
      %v1623 = vadd.f32 %v1447, %v1591
      %v1624 = vadd.f32 %v1448, %v1592
      %v1625 = vadd.f32 %v1449, %v1593
      %v1626 = vadd.f32 %v1450, %v1594
      %v1627 = vadd.f32 %v1451, %v1595
      %v1628 = vadd.f32 %v1452, %v1596
      %v1629 = vadd.f32 %v1453, %v1597
      %v1630 = vadd.f32 %v1454, %v1598
      %s1631 = scalar_lea.vmem %s1, 16
      %v1632 = vld [vmem:[%s1631] sm:$0x1]
      %v1634 = vlaneseq
      %v1635 = vshrl.u32 %v1634, 7
      %v1636 = vsub.s32 0, %v1635
      %v1637 = vrot.slane %v1632, %v1636
      %v1639 = vmul.f32 %v1637, %v1527
      %v1640 = vmul.f32 %v1637, %v1528
      %v1641 = vmul.f32 %v1637, %v1529
      %v1642 = vmul.f32 %v1637, %v1530
      %v1643 = vmul.f32 %v1637, %v1531
      %v1644 = vmul.f32 %v1637, %v1532
      %v1645 = vmul.f32 %v1637, %v1533
      %v1646 = vmul.f32 %v1637, %v1534
      %v1647 = vmul.f32 %v1637, %v1535
      %v1648 = vmul.f32 %v1637, %v1536
      %v1649 = vmul.f32 %v1637, %v1537
      %v1650 = vmul.f32 %v1637, %v1538
      %v1651 = vmul.f32 %v1637, %v1539
      %v1652 = vmul.f32 %v1637, %v1540
      %v1653 = vmul.f32 %v1637, %v1541
      %v1654 = vmul.f32 %v1637, %v1542
      %v1655 = vmul.f32 %v1637, %v1543
      %v1656 = vmul.f32 %v1637, %v1544
      %v1657 = vmul.f32 %v1637, %v1545
      %v1658 = vmul.f32 %v1637, %v1546
      %v1659 = vmul.f32 %v1637, %v1547
      %v1660 = vmul.f32 %v1637, %v1548
      %v1661 = vmul.f32 %v1637, %v1549
      %v1662 = vmul.f32 %v1637, %v1550
      %v1663 = vmul.f32 %v1637, %v1551
      %v1664 = vmul.f32 %v1637, %v1552
      %v1665 = vmul.f32 %v1637, %v1553
      %v1666 = vmul.f32 %v1637, %v1554
      %v1667 = vmul.f32 %v1637, %v1555
      %v1668 = vmul.f32 %v1637, %v1556
      %v1669 = vmul.f32 %v1637, %v1557
      %v1670 = vmul.f32 %v1637, %v1558
      %v1671 = vadd.f32 %v1495, %v1639
      %v1672 = vadd.f32 %v1496, %v1640
      %v1673 = vadd.f32 %v1497, %v1641
      %v1674 = vadd.f32 %v1498, %v1642
      %v1675 = vadd.f32 %v1499, %v1643
      %v1676 = vadd.f32 %v1500, %v1644
      %v1677 = vadd.f32 %v1501, %v1645
      %v1678 = vadd.f32 %v1502, %v1646
      %v1679 = vadd.f32 %v1503, %v1647
      %v1680 = vadd.f32 %v1504, %v1648
      %v1681 = vadd.f32 %v1505, %v1649
      %v1682 = vadd.f32 %v1506, %v1650
      %v1683 = vadd.f32 %v1507, %v1651
      %v1684 = vadd.f32 %v1508, %v1652
      %v1685 = vadd.f32 %v1509, %v1653
      %v1686 = vadd.f32 %v1510, %v1654
      %v1687 = vadd.f32 %v1511, %v1655
      %v1688 = vadd.f32 %v1512, %v1656
      %v1689 = vadd.f32 %v1513, %v1657
      %v1690 = vadd.f32 %v1514, %v1658
      %v1691 = vadd.f32 %v1515, %v1659
      %v1692 = vadd.f32 %v1516, %v1660
      %v1693 = vadd.f32 %v1517, %v1661
      %v1694 = vadd.f32 %v1518, %v1662
      %v1695 = vadd.f32 %v1519, %v1663
      %v1696 = vadd.f32 %v1520, %v1664
      %v1697 = vadd.f32 %v1521, %v1665
      %v1698 = vadd.f32 %v1522, %v1666
      %v1699 = vadd.f32 %v1523, %v1667
      %v1700 = vadd.f32 %v1524, %v1668
      %v1701 = vadd.f32 %v1525, %v1669
      %v1702 = vadd.f32 %v1526, %v1670
      %v1703 = vld [vmem:[%s1350 + $0x2] sm:$0xff]
      %v1704 = vld [vmem:[%s1350 + $0xa] sm:$0xff]
      %v1705 = vld [vmem:[%s1350 + $0x1a] sm:$0xff]
      %v1706 = vld [vmem:[%s1350 + $0x22] sm:$0xff]
      %v1707 = vld [vmem:[%s1350 + $0x32] sm:$0xff]
      %v1708 = vld [vmem:[%s1350 + $0x3a] sm:$0xff]
      %v1709 = vld [vmem:[%s1350 + $0x4a] sm:$0xff]
      %v1710 = vld [vmem:[%s1350 + $0x52] sm:$0xff]
      %v1711 = vld [vmem:[%s1350 + $0x62] sm:$0xff]
      %v1712 = vld [vmem:[%s1350 + $0x6a] sm:$0xff]
      %v1713 = vld [vmem:[%s1350 + $0x7a] sm:$0xff]
      %v1714 = vld [vmem:[%s1350 + $0x82] sm:$0xff]
      %v1715 = vld [vmem:[%s1350 + $0x92] sm:$0xff]
      %v1716 = vld [vmem:[%s1350 + $0x9a] sm:$0xff]
      %v1717 = vld [vmem:[%s1350 + $0xaa] sm:$0xff]
      %v1718 = vld [vmem:[%s1350 + $0xb2] sm:$0xff]
      %v1719 = vld [vmem:[%s1350 + $0xc2] sm:$0xff]
      %v1720 = vld [vmem:[%s1350 + $0xca] sm:$0xff]
      %v1721 = vld [vmem:[%s1350 + $0xda] sm:$0xff]
      %v1722 = vld [vmem:[%s1350 + $0xe2] sm:$0xff]
      %v1723 = vld [vmem:[%s1350 + $0xf2] sm:$0xff]
      %v1724 = vld [vmem:[%s1350 + $0xfa] sm:$0xff]
      %v1725 = vld [vmem:[%s1350 + $0x10a] sm:$0xff]
      %v1726 = vld [vmem:[%s1350 + $0x112] sm:$0xff]
      %v1727 = vld [vmem:[%s1350 + $0x122] sm:$0xff]
      %v1728 = vld [vmem:[%s1350 + $0x12a] sm:$0xff]
      %v1729 = vld [vmem:[%s1350 + $0x13a] sm:$0xff]
      %v1730 = vld [vmem:[%s1350 + $0x142] sm:$0xff]
      %v1731 = vld [vmem:[%s1350 + $0x152] sm:$0xff]
      %v1732 = vld [vmem:[%s1350 + $0x15a] sm:$0xff]
      %v1733 = vld [vmem:[%s1350 + $0x16a] sm:$0xff]
      %v1734 = vld [vmem:[%s1350 + $0x172] sm:$0xff]
      %s1735 = scalar_lea.vmem %s1, 8
      %v1736 = vld [vmem:[%s1735] sm:$0x1]
      %v1738 = vlaneseq
      %v1739 = vshrl.u32 %v1738, 7
      %v1740 = vsub.s32 0, %v1739
      %v1741 = vrot.slane %v1736, %v1740
      %v1743 = vmul.f32 %v1741, %v1703
      %v1744 = vmul.f32 %v1741, %v1704
      %v1745 = vmul.f32 %v1741, %v1705
      %v1746 = vmul.f32 %v1741, %v1706
      %v1747 = vmul.f32 %v1741, %v1707
      %v1748 = vmul.f32 %v1741, %v1708
      %v1749 = vmul.f32 %v1741, %v1709
      %v1750 = vmul.f32 %v1741, %v1710
      %v1751 = vmul.f32 %v1741, %v1711
      %v1752 = vmul.f32 %v1741, %v1712
      %v1753 = vmul.f32 %v1741, %v1713
      %v1754 = vmul.f32 %v1741, %v1714
      %v1755 = vmul.f32 %v1741, %v1715
      %v1756 = vmul.f32 %v1741, %v1716
      %v1757 = vmul.f32 %v1741, %v1717
      %v1758 = vmul.f32 %v1741, %v1718
      %v1759 = vmul.f32 %v1741, %v1719
      %v1760 = vmul.f32 %v1741, %v1720
      %v1761 = vmul.f32 %v1741, %v1721
      %v1762 = vmul.f32 %v1741, %v1722
      %v1763 = vmul.f32 %v1741, %v1723
      %v1764 = vmul.f32 %v1741, %v1724
      %v1765 = vmul.f32 %v1741, %v1725
      %v1766 = vmul.f32 %v1741, %v1726
      %v1767 = vmul.f32 %v1741, %v1727
      %v1768 = vmul.f32 %v1741, %v1728
      %v1769 = vmul.f32 %v1741, %v1729
      %v1770 = vmul.f32 %v1741, %v1730
      %v1771 = vmul.f32 %v1741, %v1731
      %v1772 = vmul.f32 %v1741, %v1732
      %v1773 = vmul.f32 %v1741, %v1733
      %v1774 = vmul.f32 %v1741, %v1734
      %v1775 = vadd.f32 %v1599, %v1743
      %v1776 = vadd.f32 %v1600, %v1744
      %v1777 = vadd.f32 %v1601, %v1745
      %v1778 = vadd.f32 %v1602, %v1746
      %v1779 = vadd.f32 %v1603, %v1747
      %v1780 = vadd.f32 %v1604, %v1748
      %v1781 = vadd.f32 %v1605, %v1749
      %v1782 = vadd.f32 %v1606, %v1750
      %v1783 = vadd.f32 %v1607, %v1751
      %v1784 = vadd.f32 %v1608, %v1752
      %v1785 = vadd.f32 %v1609, %v1753
      %v1786 = vadd.f32 %v1610, %v1754
      %v1787 = vadd.f32 %v1611, %v1755
      %v1788 = vadd.f32 %v1612, %v1756
      %v1789 = vadd.f32 %v1613, %v1757
      %v1790 = vadd.f32 %v1614, %v1758
      %v1791 = vadd.f32 %v1615, %v1759
      %v1792 = vadd.f32 %v1616, %v1760
      %v1793 = vadd.f32 %v1617, %v1761
      %v1794 = vadd.f32 %v1618, %v1762
      %v1795 = vadd.f32 %v1619, %v1763
      %v1796 = vadd.f32 %v1620, %v1764
      %v1797 = vadd.f32 %v1621, %v1765
      %v1798 = vadd.f32 %v1622, %v1766
      %v1799 = vadd.f32 %v1623, %v1767
      %v1800 = vadd.f32 %v1624, %v1768
      %v1801 = vadd.f32 %v1625, %v1769
      %v1802 = vadd.f32 %v1626, %v1770
      %v1803 = vadd.f32 %v1627, %v1771
      %v1804 = vadd.f32 %v1628, %v1772
      %v1805 = vadd.f32 %v1629, %v1773
      %v1806 = vadd.f32 %v1630, %v1774
      %s1807 = scalar_lea.vmem %s1, 17
      %v1808 = vld [vmem:[%s1807] sm:$0x1]
      %v1810 = vlaneseq
      %v1811 = vshrl.u32 %v1810, 7
      %v1812 = vsub.s32 0, %v1811
      %v1813 = vrot.slane %v1808, %v1812
      %v1815 = vmul.f32 %v1813, %v1703
      %v1816 = vmul.f32 %v1813, %v1704
      %v1817 = vmul.f32 %v1813, %v1705
      %v1818 = vmul.f32 %v1813, %v1706
      %v1819 = vmul.f32 %v1813, %v1707
      %v1820 = vmul.f32 %v1813, %v1708
      %v1821 = vmul.f32 %v1813, %v1709
      %v1822 = vmul.f32 %v1813, %v1710
      %v1823 = vmul.f32 %v1813, %v1711
      %v1824 = vmul.f32 %v1813, %v1712
      %v1825 = vmul.f32 %v1813, %v1713
      %v1826 = vmul.f32 %v1813, %v1714
      %v1827 = vmul.f32 %v1813, %v1715
      %v1828 = vmul.f32 %v1813, %v1716
      %v1829 = vmul.f32 %v1813, %v1717
      %v1830 = vmul.f32 %v1813, %v1718
      %v1831 = vmul.f32 %v1813, %v1719
      %v1832 = vmul.f32 %v1813, %v1720
      %v1833 = vmul.f32 %v1813, %v1721
      %v1834 = vmul.f32 %v1813, %v1722
      %v1835 = vmul.f32 %v1813, %v1723
      %v1836 = vmul.f32 %v1813, %v1724
      %v1837 = vmul.f32 %v1813, %v1725
      %v1838 = vmul.f32 %v1813, %v1726
      %v1839 = vmul.f32 %v1813, %v1727
      %v1840 = vmul.f32 %v1813, %v1728
      %v1841 = vmul.f32 %v1813, %v1729
      %v1842 = vmul.f32 %v1813, %v1730
      %v1843 = vmul.f32 %v1813, %v1731
      %v1844 = vmul.f32 %v1813, %v1732
      %v1845 = vmul.f32 %v1813, %v1733
      %v1846 = vmul.f32 %v1813, %v1734
      %v1847 = vadd.f32 %v1671, %v1815
      %v1848 = vadd.f32 %v1672, %v1816
      %v1849 = vadd.f32 %v1673, %v1817
      %v1850 = vadd.f32 %v1674, %v1818
      %v1851 = vadd.f32 %v1675, %v1819
      %v1852 = vadd.f32 %v1676, %v1820
      %v1853 = vadd.f32 %v1677, %v1821
      %v1854 = vadd.f32 %v1678, %v1822
      %v1855 = vadd.f32 %v1679, %v1823
      %v1856 = vadd.f32 %v1680, %v1824
      %v1857 = vadd.f32 %v1681, %v1825
      %v1858 = vadd.f32 %v1682, %v1826
      %v1859 = vadd.f32 %v1683, %v1827
      %v1860 = vadd.f32 %v1684, %v1828
      %v1861 = vadd.f32 %v1685, %v1829
      %v1862 = vadd.f32 %v1686, %v1830
      %v1863 = vadd.f32 %v1687, %v1831
      %v1864 = vadd.f32 %v1688, %v1832
      %v1865 = vadd.f32 %v1689, %v1833
      %v1866 = vadd.f32 %v1690, %v1834
      %v1867 = vadd.f32 %v1691, %v1835
      %v1868 = vadd.f32 %v1692, %v1836
      %v1869 = vadd.f32 %v1693, %v1837
      %v1870 = vadd.f32 %v1694, %v1838
      %v1871 = vadd.f32 %v1695, %v1839
      %v1872 = vadd.f32 %v1696, %v1840
      %v1873 = vadd.f32 %v1697, %v1841
      %v1874 = vadd.f32 %v1698, %v1842
      %v1875 = vadd.f32 %v1699, %v1843
      %v1876 = vadd.f32 %v1700, %v1844
      %v1877 = vadd.f32 %v1701, %v1845
      %v1878 = vadd.f32 %v1702, %v1846
      %v1879 = vld [vmem:[%s2] sm:$0x1]
      %v1881 = vlaneseq
      %v1882 = vshrl.u32 %v1881, 7
      %v1883 = vsub.s32 0, %v1882
      %v1884 = vrot.slane %v1879, %v1883
      %v1886 = vadd.f32 %v1775, %v1884
      %v1887 = vadd.f32 %v1776, %v1884
      %v1888 = vadd.f32 %v1777, %v1884
      %v1889 = vadd.f32 %v1778, %v1884
      %v1890 = vadd.f32 %v1779, %v1884
      %v1891 = vadd.f32 %v1780, %v1884
      %v1892 = vadd.f32 %v1781, %v1884
      %v1893 = vadd.f32 %v1782, %v1884
      %v1894 = vadd.f32 %v1783, %v1884
      %v1895 = vadd.f32 %v1784, %v1884
      %v1896 = vadd.f32 %v1785, %v1884
      %v1897 = vadd.f32 %v1786, %v1884
      %v1898 = vadd.f32 %v1787, %v1884
      %v1899 = vadd.f32 %v1788, %v1884
      %v1900 = vadd.f32 %v1789, %v1884
      %v1901 = vadd.f32 %v1790, %v1884
      %v1902 = vadd.f32 %v1791, %v1884
      %v1903 = vadd.f32 %v1792, %v1884
      %v1904 = vadd.f32 %v1793, %v1884
      %v1905 = vadd.f32 %v1794, %v1884
      %v1906 = vadd.f32 %v1795, %v1884
      %v1907 = vadd.f32 %v1796, %v1884
      %v1908 = vadd.f32 %v1797, %v1884
      %v1909 = vadd.f32 %v1798, %v1884
      %v1910 = vadd.f32 %v1799, %v1884
      %v1911 = vadd.f32 %v1800, %v1884
      %v1912 = vadd.f32 %v1801, %v1884
      %v1913 = vadd.f32 %v1802, %v1884
      %v1914 = vadd.f32 %v1803, %v1884
      %v1915 = vadd.f32 %v1804, %v1884
      %v1916 = vadd.f32 %v1805, %v1884
      %v1917 = vadd.f32 %v1806, %v1884
      %1918 = vst.msk [vmem:[%s172] sm:$0xff] %vm174, %v1886
      %1919 = vst.msk [vmem:[%s172 + $0x8] sm:$0xff] %vm174, %v1887
      %1920 = vst.msk [vmem:[%s172 + $0x10] sm:$0xff] %vm174, %v1888
      %1921 = vst.msk [vmem:[%s172 + $0x18] sm:$0xff] %vm174, %v1889
      %1922 = vst.msk [vmem:[%s172 + $0x20] sm:$0xff] %vm174, %v1890
      %1923 = vst.msk [vmem:[%s172 + $0x28] sm:$0xff] %vm174, %v1891
      %1924 = vst.msk [vmem:[%s172 + $0x30] sm:$0xff] %vm174, %v1892
      %1925 = vst.msk [vmem:[%s172 + $0x38] sm:$0xff] %vm174, %v1893
      %1926 = vst.msk [vmem:[%s172 + $0x40] sm:$0xff] %vm174, %v1894
      %1927 = vst.msk [vmem:[%s172 + $0x48] sm:$0xff] %vm174, %v1895
      %1928 = vst.msk [vmem:[%s172 + $0x50] sm:$0xff] %vm174, %v1896
      %1929 = vst.msk [vmem:[%s172 + $0x58] sm:$0xff] %vm174, %v1897
      %1930 = vst.msk [vmem:[%s172 + $0x60] sm:$0xff] %vm174, %v1898
      %1931 = vst.msk [vmem:[%s172 + $0x68] sm:$0xff] %vm174, %v1899
      %1932 = vst.msk [vmem:[%s172 + $0x70] sm:$0xff] %vm174, %v1900
      %1933 = vst.msk [vmem:[%s172 + $0x78] sm:$0xff] %vm174, %v1901
      %1934 = vst.msk [vmem:[%s172 + $0x80] sm:$0xff] %vm174, %v1902
      %1935 = vst.msk [vmem:[%s172 + $0x88] sm:$0xff] %vm174, %v1903
      %1936 = vst.msk [vmem:[%s172 + $0x90] sm:$0xff] %vm174, %v1904
      %1937 = vst.msk [vmem:[%s172 + $0x98] sm:$0xff] %vm174, %v1905
      %1938 = vst.msk [vmem:[%s172 + $0xa0] sm:$0xff] %vm174, %v1906
      %1939 = vst.msk [vmem:[%s172 + $0xa8] sm:$0xff] %vm174, %v1907
      %1940 = vst.msk [vmem:[%s172 + $0xb0] sm:$0xff] %vm174, %v1908
      %1941 = vst.msk [vmem:[%s172 + $0xb8] sm:$0xff] %vm174, %v1909
      %1942 = vst.msk [vmem:[%s172 + $0xc0] sm:$0xff] %vm174, %v1910
      %1943 = vst.msk [vmem:[%s172 + $0xc8] sm:$0xff] %vm174, %v1911
      %1944 = vst.msk [vmem:[%s172 + $0xd0] sm:$0xff] %vm174, %v1912
      %1945 = vst.msk [vmem:[%s172 + $0xd8] sm:$0xff] %vm174, %v1913
      %1946 = vst.msk [vmem:[%s172 + $0xe0] sm:$0xff] %vm174, %v1914
      %1947 = vst.msk [vmem:[%s172 + $0xe8] sm:$0xff] %vm174, %v1915
      %1948 = vst.msk [vmem:[%s172 + $0xf0] sm:$0xff] %vm174, %v1916
      %1949 = vst.msk [vmem:[%s172 + $0xf8] sm:$0xff] %vm174, %v1917
      %s1950 = scalar_lea.vmem %s2, 1
      %v1951 = vld [vmem:[%s1950] sm:$0x1]
      %v1953 = vlaneseq
      %v1954 = vshrl.u32 %v1953, 7
      %v1955 = vsub.s32 0, %v1954
      %v1956 = vrot.slane %v1951, %v1955
      %v1958 = vadd.f32 %v1847, %v1956
      %v1959 = vadd.f32 %v1848, %v1956
      %v1960 = vadd.f32 %v1849, %v1956
      %v1961 = vadd.f32 %v1850, %v1956
      %v1962 = vadd.f32 %v1851, %v1956
      %v1963 = vadd.f32 %v1852, %v1956
      %v1964 = vadd.f32 %v1853, %v1956
      %v1965 = vadd.f32 %v1854, %v1956
      %v1966 = vadd.f32 %v1855, %v1956
      %v1967 = vadd.f32 %v1856, %v1956
      %v1968 = vadd.f32 %v1857, %v1956
      %v1969 = vadd.f32 %v1858, %v1956
      %v1970 = vadd.f32 %v1859, %v1956
      %v1971 = vadd.f32 %v1860, %v1956
      %v1972 = vadd.f32 %v1861, %v1956
      %v1973 = vadd.f32 %v1862, %v1956
      %v1974 = vadd.f32 %v1863, %v1956
      %v1975 = vadd.f32 %v1864, %v1956
      %v1976 = vadd.f32 %v1865, %v1956
      %v1977 = vadd.f32 %v1866, %v1956
      %v1978 = vadd.f32 %v1867, %v1956
      %v1979 = vadd.f32 %v1868, %v1956
      %v1980 = vadd.f32 %v1869, %v1956
      %v1981 = vadd.f32 %v1870, %v1956
      %v1982 = vadd.f32 %v1871, %v1956
      %v1983 = vadd.f32 %v1872, %v1956
      %v1984 = vadd.f32 %v1873, %v1956
      %v1985 = vadd.f32 %v1874, %v1956
      %v1986 = vadd.f32 %v1875, %v1956
      %v1987 = vadd.f32 %v1876, %v1956
      %v1988 = vadd.f32 %v1877, %v1956
      %v1989 = vadd.f32 %v1878, %v1956
      %s1990 = scalar_lea.vmem %s172, 256
      %1991 = vst.msk [vmem:[%s1990] sm:$0xff] %vm174, %v1958
      %1992 = vst.msk [vmem:[%s1990 + $0x8] sm:$0xff] %vm174, %v1959
      %1993 = vst.msk [vmem:[%s1990 + $0x10] sm:$0xff] %vm174, %v1960
      %1994 = vst.msk [vmem:[%s1990 + $0x18] sm:$0xff] %vm174, %v1961
      %1995 = vst.msk [vmem:[%s1990 + $0x20] sm:$0xff] %vm174, %v1962
      %1996 = vst.msk [vmem:[%s1990 + $0x28] sm:$0xff] %vm174, %v1963
      %1997 = vst.msk [vmem:[%s1990 + $0x30] sm:$0xff] %vm174, %v1964
      %1998 = vst.msk [vmem:[%s1990 + $0x38] sm:$0xff] %vm174, %v1965
      %1999 = vst.msk [vmem:[%s1990 + $0x40] sm:$0xff] %vm174, %v1966
      %2000 = vst.msk [vmem:[%s1990 + $0x48] sm:$0xff] %vm174, %v1967
      %2001 = vst.msk [vmem:[%s1990 + $0x50] sm:$0xff] %vm174, %v1968
      %2002 = vst.msk [vmem:[%s1990 + $0x58] sm:$0xff] %vm174, %v1969
      %2003 = vst.msk [vmem:[%s1990 + $0x60] sm:$0xff] %vm174, %v1970
      %2004 = vst.msk [vmem:[%s1990 + $0x68] sm:$0xff] %vm174, %v1971
      %2005 = vst.msk [vmem:[%s1990 + $0x70] sm:$0xff] %vm174, %v1972
      %2006 = vst.msk [vmem:[%s1990 + $0x78] sm:$0xff] %vm174, %v1973
      %2007 = vst.msk [vmem:[%s1990 + $0x80] sm:$0xff] %vm174, %v1974
      %2008 = vst.msk [vmem:[%s1990 + $0x88] sm:$0xff] %vm174, %v1975
      %2009 = vst.msk [vmem:[%s1990 + $0x90] sm:$0xff] %vm174, %v1976
      %2010 = vst.msk [vmem:[%s1990 + $0x98] sm:$0xff] %vm174, %v1977
      %2011 = vst.msk [vmem:[%s1990 + $0xa0] sm:$0xff] %vm174, %v1978
      %2012 = vst.msk [vmem:[%s1990 + $0xa8] sm:$0xff] %vm174, %v1979
      %2013 = vst.msk [vmem:[%s1990 + $0xb0] sm:$0xff] %vm174, %v1980
      %2014 = vst.msk [vmem:[%s1990 + $0xb8] sm:$0xff] %vm174, %v1981
      %2015 = vst.msk [vmem:[%s1990 + $0xc0] sm:$0xff] %vm174, %v1982
      %2016 = vst.msk [vmem:[%s1990 + $0xc8] sm:$0xff] %vm174, %v1983
      %2017 = vst.msk [vmem:[%s1990 + $0xd0] sm:$0xff] %vm174, %v1984
      %2018 = vst.msk [vmem:[%s1990 + $0xd8] sm:$0xff] %vm174, %v1985
      %2019 = vst.msk [vmem:[%s1990 + $0xe0] sm:$0xff] %vm174, %v1986
      %2020 = vst.msk [vmem:[%s1990 + $0xe8] sm:$0xff] %vm174, %v1987
      %2021 = vst.msk [vmem:[%s1990 + $0xf0] sm:$0xff] %vm174, %v1988
      %2022 = vst.msk [vmem:[%s1990 + $0xf8] sm:$0xff] %vm174, %v1989
      %s2023 = smul.u32 2, %s14
      %p2024 = scmp.lt.s32.totalorder %s2023, 3
      %s2025 = scalar_select %p2024, %s2023, 3
      %s2026 = smul.addr %s2025, 32
      %s2027 = smul.addr %s2026, 8
      %s2028 = scalar_lea.vmem %s3, %s2027
      // Predicated region
      $region33: #{depthwise_conv.1} parent=31 // pred_check
        %p2029 = pneg %p100
      $region34: #{depthwise_conv.1} parent=31 // pred_check_branch
        %2031 = sbr.rel (%p2029) target = $region36
      $region35: #{depthwise_conv.1} parent=31 // pred_region
        %s2032 = smul.u32 2, %s14
      $region36: #{depthwise_conv.1} parent=31 // pred_fallthru
        _
    $region32: #{depthwise_conv.1} parent=5 // pred_fallthru
      _
    %p2033 = scmp.le.s32.totalorder 2, %s9
    // Predicated region
    $region37: #{depthwise_conv.1} parent=5 // pred_check
      %p2034 = pneg %p2033
    $region38: #{depthwise_conv.1} parent=5 // pred_check_branch
      %2036 = sbr.rel (%p2034) target = $region40
    $region39: #{depthwise_conv.1} parent=5 // pred_region
      %s2037 = ssub.s32 %s9, 2
      // Predicated region
      $region41: #{depthwise_conv.1} parent=39 // pred_check
        %p2038 = pneg %p106
      $region42: #{depthwise_conv.1} parent=39 // pred_check_branch
        %2040 = sbr.rel (%p2038) target = $region44
      $region43: #{depthwise_conv.1} parent=39 // pred_region
        %s2041 = smul.u32 2, %s15
        %p2042 = scmp.lt.s32.totalorder %s2041, 3
        %s2043 = scalar_select %p2042, %s2041, 3
        %s2044 = smul.addr %s2043, 32
        %s2045 = smul.addr %s2044, 8
        %s2046 = scalar_lea.vmem %s3, %s2045
      $region44: #{depthwise_conv.1} parent=39 // pred_fallthru
        _
    $region40: #{depthwise_conv.1} parent=5 // pred_fallthru
      _
  $region6: #{depthwise_conv.1} parent=0 // loop_footer
    %s13 = sadd.s32 1, %s9
  $region7: #{depthwise_conv.1} parent=0 // loop_footer_branch
    %8 = sbr.rel target = $region3
  $region8: #{depthwise_conv.1} parent=0 // loop_exit
    _

</llo_original>
